<compile_context>
chip_gen: v7x
topology: tpu7x:2x2x1
jax: 0.10.0
libtpu: 0.0.40
codegen_flags: <defaults>
</compile_context>

<pallas_src>
import functools

import jax
import jax.numpy as jnp
from jax import lax
from jax.experimental import pallas as pl
from jax.experimental.pallas import tpu as pltpu

K = 5
PAD = K // 2
BN_EPS = 1e-5


def _fused_attention_kernel(x_ref, w_ref, b_ref, o_ref, pad_ref, s_ref, *, H, W):
    """Fused conv1->bn1->relu->conv2->bn2->relu for one batch element.

    x_ref:   (C, H*W)        flattened input image (row stride = W)
    w_ref:   (2, C, K*K*C)   per-layer effective weights (BN scale folded in)
    b_ref:   (2, C, 1)       per-layer folded BN bias
    o_ref:   (C, H*W)        output
    pad_ref: (C, LFLAT) VMEM flat, H-zero-padded image with a small guard
    s_ref:   (K*K*C, H*W)    VMEM im2col patch matrix (rebuilt per layer)
    """
    C = x_ref.shape[0]
    HW = H * W

    # Zero the padded scratch once; its zero borders are reused by both layers
    # (only the interior [INT, INT+HW) is overwritten per layer).
    pad_ref[...] = jnp.zeros_like(pad_ref)

    # Column-validity masks for the 5 horizontal tap offsets (hoisted, shared
    # by both layers).  n -> output column c = n % W; tap kw reads column
    # c + kw - PAD, valid iff inside [0, W).
    col = lax.broadcasted_iota(jnp.int32, (1, HW), 1) % W
    masks = []
    for kw in range(K):
        shift = kw - PAD
        valid = (col + shift >= 0) & (col + shift < W)
        masks.append(jnp.broadcast_to(valid, (C, HW)))

    INT = PAD + PAD * W  # flat offset of original image row 0 inside pad_ref

    def conv_bn_relu(layer):
        # Build the (K*K*C, HW) patch matrix: each tap is a lane-slice of the
        # flat padded image; out-of-row columns are masked to zero.
        for kh in range(K):
            for kw in range(K):
                t = kh * K + kw
                start = kh * W + kw          # = PAD + (kh*W + kw - PAD)
                sl = pad_ref[:, start:start + HW]                 # (C, HW)
                s_ref[t * C:(t + 1) * C, :] = jnp.where(masks[kw], sl, 0.0)
        # One deep contraction on the MXU: (C, K*K*C) x (K*K*C, HW).
        y = jnp.dot(w_ref[layer], s_ref[...],
                    preferred_element_type=jnp.float32)
        # Folded BN bias + ReLU.  MaxPool2d(1) and eval-mode Dropout are
        # identities, so nothing else to do.
        return jnp.maximum(y + b_ref[layer], 0.0)

    # Layer 1: conv1 + bn1 + mp1 + relu1 (+ drop1 = identity in eval).
    pad_ref[:, INT:INT + HW] = x_ref[...].astype(jnp.float32)
    h = conv_bn_relu(0)

    # Layer 2: conv2 + bn2 + mp2 + relu2 (intermediate stays in VMEM).
    pad_ref[:, INT:INT + HW] = h
    o_ref[...] = conv_bn_relu(1).astype(o_ref.dtype)


def fold_bn(gamma, beta, running_mean, running_var):
    scale = gamma / jnp.sqrt(running_var + BN_EPS)
    bias = beta - running_mean * scale
    return scale, bias


def _effective_weight(w_oihw, scale):
    """Fold BN scale into conv weights; (Cout,Cin,K,K) -> (Cout, K*K*Cin)
    with contraction index ordered (kh, kw, ci) to match the kernel's S."""
    cout, cin = w_oihw.shape[0], w_oihw.shape[1]
    w = w_oihw * scale[:, None, None, None]
    return jnp.transpose(w, (0, 2, 3, 1)).reshape(cout, K * K * cin)


def attention_model_forward(x_nchw, params):
    """NCHW in / NCHW out, matching the PyTorch module (eval mode)."""
    B, C, H, W = x_nchw.shape
    HW = H * W
    KKC = K * K * C

    s1, b1 = fold_bn(*params["bn1"])
    s2, b2 = fold_bn(*params["bn2"])
    w_eff = jnp.stack([_effective_weight(params["w1"], s1),
                       _effective_weight(params["w2"], s2)]).astype(jnp.float32)
    b_eff = jnp.stack([b1, b2]).reshape(2, C, 1).astype(jnp.float32)

    # Flat padded-image scratch length: guard + (H+2*PAD) rows of width W plus
    # tap slack, rounded up to a lane multiple.
    lflat = -(-(PAD + (H + 2 * PAD) * W + K) // 128) * 128

    x_flat = x_nchw.reshape(B, C, HW)  # free row-major reshape (no transpose)

    out = pl.pallas_call(
        functools.partial(_fused_attention_kernel, H=H, W=W),
        out_shape=jax.ShapeDtypeStruct((B, C, HW), x_nchw.dtype),
        grid_spec=pltpu.PrefetchScalarGridSpec(
            num_scalar_prefetch=0,
            grid=(B,),
            in_specs=[
                # one flattened image per grid step (batch dim squeezed)
                pl.BlockSpec((None, C, HW), lambda b: (b, 0, 0)),
                # effective weights + biases, resident for every step
                pl.BlockSpec((2, C, KKC), lambda b: (0, 0, 0)),
                pl.BlockSpec((2, C, 1), lambda b: (0, 0, 0)),
            ],
            out_specs=pl.BlockSpec((None, C, HW), lambda b: (b, 0, 0)),
            scratch_shapes=[
                pltpu.VMEM((C, lflat), jnp.float32),   # flat padded image
                pltpu.VMEM((KKC, HW), jnp.float32),    # im2col patch matrix
            ],
        ),
        compiler_params=pltpu.CompilerParams(
            dimension_semantics=("parallel",)),  # v7x: one batch elem per TC
    )(x_flat, w_eff, b_eff)

    return out.reshape(B, C, H, W)


def init_params(key, in_chans, out_chans):
    ks = jax.random.split(key, 4)
    # Conv weights kept in PyTorch OIHW layout: (out, in, kH, kW).
    w1 = 0.1 * jax.random.normal(ks[0], (in_chans, in_chans, K, K), jnp.float32)
    w2 = 0.1 * jax.random.normal(ks[1], (out_chans, in_chans, K, K), jnp.float32)

    def bn(k, c):
        k1, k2, k3, k4 = jax.random.split(k, 4)
        gamma = 1.0 + 0.1 * jax.random.normal(k1, (c,), jnp.float32)
        beta = 0.1 * jax.random.normal(k2, (c,), jnp.float32)
        running_mean = 0.05 * jax.random.normal(k3, (c,), jnp.float32)
        running_var = jax.random.uniform(k4, (c,), jnp.float32, 0.5, 1.5)
        return (gamma, beta, running_mean, running_var)

    return {
        "w1": w1,
        "w2": w2,
        "bn1": bn(ks[2], in_chans),
        "bn2": bn(ks[3], out_chans),  # requires out_chans == in_chans (see note)
    }


def reference_forward(x_nchw, params):
    """Pure-JAX reference (lax conv) for correctness checking."""
    x = jnp.transpose(x_nchw, (0, 2, 3, 1))  # NCHW -> NHWC

    def block(x, w_oihw, bn):
        w = jnp.transpose(w_oihw, (2, 3, 1, 0))  # OIHW -> HWIO
        y = lax.conv_general_dilated(
            x, w, window_strides=(1, 1), padding="SAME",
            dimension_numbers=("NHWC", "HWIO", "NHWC"))
        s, b = fold_bn(*bn)
        return jnp.maximum(y * s + b, 0.0)

    y = block(x, params["w1"], params["bn1"])
    y = block(y, params["w2"], params["bn2"])
    return jnp.transpose(y, (0, 3, 1, 2))


if __name__ == "__main__":
    in_chans = 4
    out_chans = 4   # must equal in_chans (bn2 = BatchNorm2d(in_chans))
    B, H, W = 2, 16, 16

    key = jax.random.PRNGKey(0)
    k_params, k_x = jax.random.split(key)
    params = init_params(k_params, in_chans, out_chans)
    x = jax.random.normal(k_x, (B, in_chans, H, W), jnp.float32)

    out = jax.jit(attention_model_forward)(x, params)
    out = jax.block_until_ready(out)

    ref = reference_forward(x, params)
    assert out.shape == (B, out_chans, H, W), out.shape
    assert jnp.allclose(out, ref, atol=1e-4, rtol=1e-4), (
        float(jnp.max(jnp.abs(out - ref))))

    print("KERNEL_OK")
</pallas_src>

<mosaic_0001>
module attributes {stable_mosaic.version = 11 : i64} {
  func.func @_fused_attention_kernel(%arg0: i32, %arg1: memref<1x4x256xf32, #tpu.memory_space<vmem>>, %arg2: memref<2x4x100xf32, #tpu.memory_space<vmem>>, %arg3: memref<2x4x1xf32, #tpu.memory_space<vmem>>, %arg4: memref<1x4x256xf32, #tpu.memory_space<vmem>>, %arg5: memref<4x384xf32, #tpu.memory_space<vmem>>, %arg6: memref<100x256xf32, #tpu.memory_space<vmem>>) attributes {dimension_semantics = [#tpu.dimension_semantics<parallel>], iteration_bounds = array<i64: 2>, scalar_prefetch = 0 : i64, scratch_operands = 2 : i64, tpu.core_type = #tpu.core_type<tc>, window_params = [{transform_indices = @transform_0, window_bounds = array<i64: 1, 4, 256>}, {pipeline_mode = #tpu.pipeline_mode<synchronous>, transform_indices = @transform_1, window_bounds = array<i64: 2, 4, 100>}, {pipeline_mode = #tpu.pipeline_mode<synchronous>, transform_indices = @transform_2, window_bounds = array<i64: 2, 4, 1>}, {transform_indices = @transform_3, window_bounds = array<i64: 1, 4, 256>}]} {
    %cst = arith.constant 0.000000e+00 : f32
    %0 = vector.broadcast %cst : f32 to vector<4x384xf32>
    %c0 = arith.constant 0 : index
    %c0_0 = arith.constant 0 : index
    %1 = vector.load %arg5[%c0, %c0_0] : memref<4x384xf32, #tpu.memory_space<vmem>>, vector<4x384xf32>
    tpu.vector_store %arg5[%c0, %c0_0], %0 {strides = array<i32>} : memref<4x384xf32, #tpu.memory_space<vmem>>, vector<4x384xf32>,
    %2 = tpu.iota {dimensions = array<i32: 1>} : vector<1x256xi32>
    %c16_i32 = arith.constant 16 : i32
    %c0_i32 = arith.constant 0 : i32
    %3 = arith.cmpi eq, %c16_i32, %c0_i32 : i32
    %c1_i32 = arith.constant 1 : i32
    %4 = arith.select %3, %c1_i32, %c16_i32 : i32
    %5 = vector.broadcast %4 : i32 to vector<1x256xi32>
    %6 = arith.remsi %2, %5 : vector<1x256xi32>
    %c0_i32_1 = arith.constant 0 : i32
    %7 = vector.broadcast %c0_i32_1 : i32 to vector<1x256xi32>
    %8 = arith.cmpi ne, %6, %7 : vector<1x256xi32>
    %c0_i32_2 = arith.constant 0 : i32
    %9 = vector.broadcast %c0_i32_2 : i32 to vector<1x256xi32>
    %10 = arith.cmpi slt, %6, %9 : vector<1x256xi32>
    %c0_i32_3 = arith.constant 0 : i32
    %11 = arith.cmpi slt, %4, %c0_i32_3 : i32
    %12 = vector.broadcast %11 : i1 to vector<1x256xi1>
    %13 = vector.broadcast %12 : vector<1x256xi1> to vector<1x256xi1>
    %14 = arith.xori %10, %13 : vector<1x256xi1>
    %15 = arith.andi %14, %8 : vector<1x256xi1>
    %16 = vector.broadcast %4 : i32 to vector<1x256xi32>
    %17 = arith.addi %6, %16 : vector<1x256xi32>
    %18 = arith.select %15, %17, %6 : vector<1x256xi1>, vector<1x256xi32>
    %c-2_i32 = arith.constant -2 : i32
    %19 = vector.broadcast %c-2_i32 : i32 to vector<1x256xi32>
    %20 = arith.addi %18, %19 : vector<1x256xi32>
    %c0_i32_4 = arith.constant 0 : i32
    %21 = vector.broadcast %c0_i32_4 : i32 to vector<1x256xi32>
    %22 = arith.cmpi sge, %20, %21 : vector<1x256xi32>
    %c-2_i32_5 = arith.constant -2 : i32
    %23 = vector.broadcast %c-2_i32_5 : i32 to vector<1x256xi32>
    %24 = arith.addi %18, %23 : vector<1x256xi32>
    %c16_i32_6 = arith.constant 16 : i32
    %25 = vector.broadcast %c16_i32_6 : i32 to vector<1x256xi32>
    %26 = arith.cmpi slt, %24, %25 : vector<1x256xi32>
    %27 = arith.andi %22, %26 : vector<1x256xi1>
    %28 = vector.shape_cast %27 : vector<1x256xi1> to vector<1x256xi1>
    %29 = vector.broadcast %28 : vector<1x256xi1> to vector<4x256xi1>
    %c-1_i32 = arith.constant -1 : i32
    %30 = vector.broadcast %c-1_i32 : i32 to vector<1x256xi32>
    %31 = arith.addi %18, %30 : vector<1x256xi32>
    %c0_i32_7 = arith.constant 0 : i32
    %32 = vector.broadcast %c0_i32_7 : i32 to vector<1x256xi32>
    %33 = arith.cmpi sge, %31, %32 : vector<1x256xi32>
    %c-1_i32_8 = arith.constant -1 : i32
    %34 = vector.broadcast %c-1_i32_8 : i32 to vector<1x256xi32>
    %35 = arith.addi %18, %34 : vector<1x256xi32>
    %c16_i32_9 = arith.constant 16 : i32
    %36 = vector.broadcast %c16_i32_9 : i32 to vector<1x256xi32>
    %37 = arith.cmpi slt, %35, %36 : vector<1x256xi32>
    %38 = arith.andi %33, %37 : vector<1x256xi1>
    %39 = vector.shape_cast %38 : vector<1x256xi1> to vector<1x256xi1>
    %40 = vector.broadcast %39 : vector<1x256xi1> to vector<4x256xi1>
    %c0_i32_10 = arith.constant 0 : i32
    %41 = vector.broadcast %c0_i32_10 : i32 to vector<1x256xi32>
    %42 = arith.addi %18, %41 : vector<1x256xi32>
    %c0_i32_11 = arith.constant 0 : i32
    %43 = vector.broadcast %c0_i32_11 : i32 to vector<1x256xi32>
    %44 = arith.cmpi sge, %42, %43 : vector<1x256xi32>
    %c0_i32_12 = arith.constant 0 : i32
    %45 = vector.broadcast %c0_i32_12 : i32 to vector<1x256xi32>
    %46 = arith.addi %18, %45 : vector<1x256xi32>
    %c16_i32_13 = arith.constant 16 : i32
    %47 = vector.broadcast %c16_i32_13 : i32 to vector<1x256xi32>
    %48 = arith.cmpi slt, %46, %47 : vector<1x256xi32>
    %49 = arith.andi %44, %48 : vector<1x256xi1>
    %50 = vector.shape_cast %49 : vector<1x256xi1> to vector<1x256xi1>
    %51 = vector.broadcast %50 : vector<1x256xi1> to vector<4x256xi1>
    %c1_i32_14 = arith.constant 1 : i32
    %52 = vector.broadcast %c1_i32_14 : i32 to vector<1x256xi32>
    %53 = arith.addi %18, %52 : vector<1x256xi32>
    %c0_i32_15 = arith.constant 0 : i32
    %54 = vector.broadcast %c0_i32_15 : i32 to vector<1x256xi32>
    %55 = arith.cmpi sge, %53, %54 : vector<1x256xi32>
    %c1_i32_16 = arith.constant 1 : i32
    %56 = vector.broadcast %c1_i32_16 : i32 to vector<1x256xi32>
    %57 = arith.addi %18, %56 : vector<1x256xi32>
    %c16_i32_17 = arith.constant 16 : i32
    %58 = vector.broadcast %c16_i32_17 : i32 to vector<1x256xi32>
    %59 = arith.cmpi slt, %57, %58 : vector<1x256xi32>
    %60 = arith.andi %55, %59 : vector<1x256xi1>
    %61 = vector.shape_cast %60 : vector<1x256xi1> to vector<1x256xi1>
    %62 = vector.broadcast %61 : vector<1x256xi1> to vector<4x256xi1>
    %c2_i32 = arith.constant 2 : i32
    %63 = vector.broadcast %c2_i32 : i32 to vector<1x256xi32>
    %64 = arith.addi %18, %63 : vector<1x256xi32>
    %c0_i32_18 = arith.constant 0 : i32
    %65 = vector.broadcast %c0_i32_18 : i32 to vector<1x256xi32>
    %66 = arith.cmpi sge, %64, %65 : vector<1x256xi32>
    %c2_i32_19 = arith.constant 2 : i32
    %67 = vector.broadcast %c2_i32_19 : i32 to vector<1x256xi32>
    %68 = arith.addi %18, %67 : vector<1x256xi32>
    %c16_i32_20 = arith.constant 16 : i32
    %69 = vector.broadcast %c16_i32_20 : i32 to vector<1x256xi32>
    %70 = arith.cmpi slt, %68, %69 : vector<1x256xi32>
    %71 = arith.andi %66, %70 : vector<1x256xi1>
    %72 = vector.shape_cast %71 : vector<1x256xi1> to vector<1x256xi1>
    %73 = vector.broadcast %72 : vector<1x256xi1> to vector<4x256xi1>
    %c0_21 = arith.constant 0 : index
    %c0_22 = arith.constant 0 : index
    %c0_23 = arith.constant 0 : index
    %74 = vector.load %arg1[%c0_21, %c0_22, %c0_23] : memref<1x4x256xf32, #tpu.memory_space<vmem>>, vector<1x4x256xf32>
    %75 = vector.shape_cast %74 : vector<1x4x256xf32> to vector<4x256xf32>
    %c0_24 = arith.constant 0 : index
    %c34 = arith.constant 34 : index
    %76 = vector.load %arg5[%c0_24, %c34] : memref<4x384xf32, #tpu.memory_space<vmem>>, vector<4x256xf32>
    tpu.vector_store %arg5[%c0_24, %c34], %75 {strides = array<i32>} : memref<4x384xf32, #tpu.memory_space<vmem>>, vector<4x256xf32>,
    %c0_25 = arith.constant 0 : index
    %c0_26 = arith.constant 0 : index
    %77 = vector.load %arg5[%c0_25, %c0_26] : memref<4x384xf32, #tpu.memory_space<vmem>>, vector<4x256xf32>
    %cst_27 = arith.constant 0.000000e+00 : f32
    %78 = vector.broadcast %cst_27 : f32 to vector<4x256xf32>
    %79 = arith.select %29, %77, %78 : vector<4x256xi1>, vector<4x256xf32>
    %c0_28 = arith.constant 0 : index
    %c0_29 = arith.constant 0 : index
    %80 = vector.load %arg6[%c0_28, %c0_29] : memref<100x256xf32, #tpu.memory_space<vmem>>, vector<4x256xf32>
    tpu.vector_store %arg6[%c0_28, %c0_29], %79 {strides = array<i32>} : memref<100x256xf32, #tpu.memory_space<vmem>>, vector<4x256xf32>,
    %c0_30 = arith.constant 0 : index
    %c1 = arith.constant 1 : index
    %81 = vector.load %arg5[%c0_30, %c1] : memref<4x384xf32, #tpu.memory_space<vmem>>, vector<4x256xf32>
    %cst_31 = arith.constant 0.000000e+00 : f32
    %82 = vector.broadcast %cst_31 : f32 to vector<4x256xf32>
    %83 = arith.select %40, %81, %82 : vector<4x256xi1>, vector<4x256xf32>
    %c4 = arith.constant 4 : index
    %c0_32 = arith.constant 0 : index
    %84 = vector.load %arg6[%c4, %c0_32] : memref<100x256xf32, #tpu.memory_space<vmem>>, vector<4x256xf32>
    tpu.vector_store %arg6[%c4, %c0_32], %83 {strides = array<i32>} : memref<100x256xf32, #tpu.memory_space<vmem>>, vector<4x256xf32>,
    %c0_33 = arith.constant 0 : index
    %c2 = arith.constant 2 : index
    %85 = vector.load %arg5[%c0_33, %c2] : memref<4x384xf32, #tpu.memory_space<vmem>>, vector<4x256xf32>
    %cst_34 = arith.constant 0.000000e+00 : f32
    %86 = vector.broadcast %cst_34 : f32 to vector<4x256xf32>
    %87 = arith.select %51, %85, %86 : vector<4x256xi1>, vector<4x256xf32>
    %c8 = arith.constant 8 : index
    %c0_35 = arith.constant 0 : index
    %88 = vector.load %arg6[%c8, %c0_35] : memref<100x256xf32, #tpu.memory_space<vmem>>, vector<4x256xf32>
    tpu.vector_store %arg6[%c8, %c0_35], %87 {strides = array<i32>} : memref<100x256xf32, #tpu.memory_space<vmem>>, vector<4x256xf32>,
    %c0_36 = arith.constant 0 : index
    %c3 = arith.constant 3 : index
    %89 = vector.load %arg5[%c0_36, %c3] : memref<4x384xf32, #tpu.memory_space<vmem>>, vector<4x256xf32>
    %cst_37 = arith.constant 0.000000e+00 : f32
    %90 = vector.broadcast %cst_37 : f32 to vector<4x256xf32>
    %91 = arith.select %62, %89, %90 : vector<4x256xi1>, vector<4x256xf32>
    %c12 = arith.constant 12 : index
    %c0_38 = arith.constant 0 : index
    %92 = vector.load %arg6[%c12, %c0_38] : memref<100x256xf32, #tpu.memory_space<vmem>>, vector<4x256xf32>
    tpu.vector_store %arg6[%c12, %c0_38], %91 {strides = array<i32>} : memref<100x256xf32, #tpu.memory_space<vmem>>, vector<4x256xf32>,
    %c0_39 = arith.constant 0 : index
    %c4_40 = arith.constant 4 : index
    %93 = vector.load %arg5[%c0_39, %c4_40] : memref<4x384xf32, #tpu.memory_space<vmem>>, vector<4x256xf32>
    %cst_41 = arith.constant 0.000000e+00 : f32
    %94 = vector.broadcast %cst_41 : f32 to vector<4x256xf32>
    %95 = arith.select %73, %93, %94 : vector<4x256xi1>, vector<4x256xf32>
    %c16 = arith.constant 16 : index
    %c0_42 = arith.constant 0 : index
    %96 = vector.load %arg6[%c16, %c0_42] : memref<100x256xf32, #tpu.memory_space<vmem>>, vector<4x256xf32>
    tpu.vector_store %arg6[%c16, %c0_42], %95 {strides = array<i32>} : memref<100x256xf32, #tpu.memory_space<vmem>>, vector<4x256xf32>,
    %c0_43 = arith.constant 0 : index
    %c16_44 = arith.constant 16 : index
    %97 = vector.load %arg5[%c0_43, %c16_44] : memref<4x384xf32, #tpu.memory_space<vmem>>, vector<4x256xf32>
    %cst_45 = arith.constant 0.000000e+00 : f32
    %98 = vector.broadcast %cst_45 : f32 to vector<4x256xf32>
    %99 = arith.select %29, %97, %98 : vector<4x256xi1>, vector<4x256xf32>
    %c20 = arith.constant 20 : index
    %c0_46 = arith.constant 0 : index
    %100 = vector.load %arg6[%c20, %c0_46] : memref<100x256xf32, #tpu.memory_space<vmem>>, vector<4x256xf32>
    tpu.vector_store %arg6[%c20, %c0_46], %99 {strides = array<i32>} : memref<100x256xf32, #tpu.memory_space<vmem>>, vector<4x256xf32>,
    %c0_47 = arith.constant 0 : index
    %c17 = arith.constant 17 : index
    %101 = vector.load %arg5[%c0_47, %c17] : memref<4x384xf32, #tpu.memory_space<vmem>>, vector<4x256xf32>
    %cst_48 = arith.constant 0.000000e+00 : f32
    %102 = vector.broadcast %cst_48 : f32 to vector<4x256xf32>
    %103 = arith.select %40, %101, %102 : vector<4x256xi1>, vector<4x256xf32>
    %c24 = arith.constant 24 : index
    %c0_49 = arith.constant 0 : index
    %104 = vector.load %arg6[%c24, %c0_49] : memref<100x256xf32, #tpu.memory_space<vmem>>, vector<4x256xf32>
    tpu.vector_store %arg6[%c24, %c0_49], %103 {strides = array<i32>} : memref<100x256xf32, #tpu.memory_space<vmem>>, vector<4x256xf32>,
    %c0_50 = arith.constant 0 : index
    %c18 = arith.constant 18 : index
    %105 = vector.load %arg5[%c0_50, %c18] : memref<4x384xf32, #tpu.memory_space<vmem>>, vector<4x256xf32>
    %cst_51 = arith.constant 0.000000e+00 : f32
    %106 = vector.broadcast %cst_51 : f32 to vector<4x256xf32>
    %107 = arith.select %51, %105, %106 : vector<4x256xi1>, vector<4x256xf32>
    %c28 = arith.constant 28 : index
    %c0_52 = arith.constant 0 : index
    %108 = vector.load %arg6[%c28, %c0_52] : memref<100x256xf32, #tpu.memory_space<vmem>>, vector<4x256xf32>
    tpu.vector_store %arg6[%c28, %c0_52], %107 {strides = array<i32>} : memref<100x256xf32, #tpu.memory_space<vmem>>, vector<4x256xf32>,
    %c0_53 = arith.constant 0 : index
    %c19 = arith.constant 19 : index
    %109 = vector.load %arg5[%c0_53, %c19] : memref<4x384xf32, #tpu.memory_space<vmem>>, vector<4x256xf32>
    %cst_54 = arith.constant 0.000000e+00 : f32
    %110 = vector.broadcast %cst_54 : f32 to vector<4x256xf32>
    %111 = arith.select %62, %109, %110 : vector<4x256xi1>, vector<4x256xf32>
    %c32 = arith.constant 32 : index
    %c0_55 = arith.constant 0 : index
    %112 = vector.load %arg6[%c32, %c0_55] : memref<100x256xf32, #tpu.memory_space<vmem>>, vector<4x256xf32>
    tpu.vector_store %arg6[%c32, %c0_55], %111 {strides = array<i32>} : memref<100x256xf32, #tpu.memory_space<vmem>>, vector<4x256xf32>,
    %c0_56 = arith.constant 0 : index
    %c20_57 = arith.constant 20 : index
    %113 = vector.load %arg5[%c0_56, %c20_57] : memref<4x384xf32, #tpu.memory_space<vmem>>, vector<4x256xf32>
    %cst_58 = arith.constant 0.000000e+00 : f32
    %114 = vector.broadcast %cst_58 : f32 to vector<4x256xf32>
    %115 = arith.select %73, %113, %114 : vector<4x256xi1>, vector<4x256xf32>
    %c36 = arith.constant 36 : index
    %c0_59 = arith.constant 0 : index
    %116 = vector.load %arg6[%c36, %c0_59] : memref<100x256xf32, #tpu.memory_space<vmem>>, vector<4x256xf32>
    tpu.vector_store %arg6[%c36, %c0_59], %115 {strides = array<i32>} : memref<100x256xf32, #tpu.memory_space<vmem>>, vector<4x256xf32>,
    %c0_60 = arith.constant 0 : index
    %c32_61 = arith.constant 32 : index
    %117 = vector.load %arg5[%c0_60, %c32_61] : memref<4x384xf32, #tpu.memory_space<vmem>>, vector<4x256xf32>
    %cst_62 = arith.constant 0.000000e+00 : f32
    %118 = vector.broadcast %cst_62 : f32 to vector<4x256xf32>
    %119 = arith.select %29, %117, %118 : vector<4x256xi1>, vector<4x256xf32>
    %c40 = arith.constant 40 : index
    %c0_63 = arith.constant 0 : index
    %120 = vector.load %arg6[%c40, %c0_63] : memref<100x256xf32, #tpu.memory_space<vmem>>, vector<4x256xf32>
    tpu.vector_store %arg6[%c40, %c0_63], %119 {strides = array<i32>} : memref<100x256xf32, #tpu.memory_space<vmem>>, vector<4x256xf32>,
    %c0_64 = arith.constant 0 : index
    %c33 = arith.constant 33 : index
    %121 = vector.load %arg5[%c0_64, %c33] : memref<4x384xf32, #tpu.memory_space<vmem>>, vector<4x256xf32>
    %cst_65 = arith.constant 0.000000e+00 : f32
    %122 = vector.broadcast %cst_65 : f32 to vector<4x256xf32>
    %123 = arith.select %40, %121, %122 : vector<4x256xi1>, vector<4x256xf32>
    %c44 = arith.constant 44 : index
    %c0_66 = arith.constant 0 : index
    %124 = vector.load %arg6[%c44, %c0_66] : memref<100x256xf32, #tpu.memory_space<vmem>>, vector<4x256xf32>
    tpu.vector_store %arg6[%c44, %c0_66], %123 {strides = array<i32>} : memref<100x256xf32, #tpu.memory_space<vmem>>, vector<4x256xf32>,
    %c0_67 = arith.constant 0 : index
    %c34_68 = arith.constant 34 : index
    %125 = vector.load %arg5[%c0_67, %c34_68] : memref<4x384xf32, #tpu.memory_space<vmem>>, vector<4x256xf32>
    %cst_69 = arith.constant 0.000000e+00 : f32
    %126 = vector.broadcast %cst_69 : f32 to vector<4x256xf32>
    %127 = arith.select %51, %125, %126 : vector<4x256xi1>, vector<4x256xf32>
    %c48 = arith.constant 48 : index
    %c0_70 = arith.constant 0 : index
    %128 = vector.load %arg6[%c48, %c0_70] : memref<100x256xf32, #tpu.memory_space<vmem>>, vector<4x256xf32>
    tpu.vector_store %arg6[%c48, %c0_70], %127 {strides = array<i32>} : memref<100x256xf32, #tpu.memory_space<vmem>>, vector<4x256xf32>,
    %c0_71 = arith.constant 0 : index
    %c35 = arith.constant 35 : index
    %129 = vector.load %arg5[%c0_71, %c35] : memref<4x384xf32, #tpu.memory_space<vmem>>, vector<4x256xf32>
    %cst_72 = arith.constant 0.000000e+00 : f32
    %130 = vector.broadcast %cst_72 : f32 to vector<4x256xf32>
    %131 = arith.select %62, %129, %130 : vector<4x256xi1>, vector<4x256xf32>
    %c52 = arith.constant 52 : index
    %c0_73 = arith.constant 0 : index
    %132 = vector.load %arg6[%c52, %c0_73] : memref<100x256xf32, #tpu.memory_space<vmem>>, vector<4x256xf32>
    tpu.vector_store %arg6[%c52, %c0_73], %131 {strides = array<i32>} : memref<100x256xf32, #tpu.memory_space<vmem>>, vector<4x256xf32>,
    %c0_74 = arith.constant 0 : index
    %c36_75 = arith.constant 36 : index
    %133 = vector.load %arg5[%c0_74, %c36_75] : memref<4x384xf32, #tpu.memory_space<vmem>>, vector<4x256xf32>
    %cst_76 = arith.constant 0.000000e+00 : f32
    %134 = vector.broadcast %cst_76 : f32 to vector<4x256xf32>
    %135 = arith.select %73, %133, %134 : vector<4x256xi1>, vector<4x256xf32>
    %c56 = arith.constant 56 : index
    %c0_77 = arith.constant 0 : index
    %136 = vector.load %arg6[%c56, %c0_77] : memref<100x256xf32, #tpu.memory_space<vmem>>, vector<4x256xf32>
    tpu.vector_store %arg6[%c56, %c0_77], %135 {strides = array<i32>} : memref<100x256xf32, #tpu.memory_space<vmem>>, vector<4x256xf32>,
    %c0_78 = arith.constant 0 : index
    %c48_79 = arith.constant 48 : index
    %137 = vector.load %arg5[%c0_78, %c48_79] : memref<4x384xf32, #tpu.memory_space<vmem>>, vector<4x256xf32>
    %cst_80 = arith.constant 0.000000e+00 : f32
    %138 = vector.broadcast %cst_80 : f32 to vector<4x256xf32>
    %139 = arith.select %29, %137, %138 : vector<4x256xi1>, vector<4x256xf32>
    %c60 = arith.constant 60 : index
    %c0_81 = arith.constant 0 : index
    %140 = vector.load %arg6[%c60, %c0_81] : memref<100x256xf32, #tpu.memory_space<vmem>>, vector<4x256xf32>
    tpu.vector_store %arg6[%c60, %c0_81], %139 {strides = array<i32>} : memref<100x256xf32, #tpu.memory_space<vmem>>, vector<4x256xf32>,
    %c0_82 = arith.constant 0 : index
    %c49 = arith.constant 49 : index
    %141 = vector.load %arg5[%c0_82, %c49] : memref<4x384xf32, #tpu.memory_space<vmem>>, vector<4x256xf32>
    %cst_83 = arith.constant 0.000000e+00 : f32
    %142 = vector.broadcast %cst_83 : f32 to vector<4x256xf32>
    %143 = arith.select %40, %141, %142 : vector<4x256xi1>, vector<4x256xf32>
    %c64 = arith.constant 64 : index
    %c0_84 = arith.constant 0 : index
    %144 = vector.load %arg6[%c64, %c0_84] : memref<100x256xf32, #tpu.memory_space<vmem>>, vector<4x256xf32>
    tpu.vector_store %arg6[%c64, %c0_84], %143 {strides = array<i32>} : memref<100x256xf32, #tpu.memory_space<vmem>>, vector<4x256xf32>,
    %c0_85 = arith.constant 0 : index
    %c50 = arith.constant 50 : index
    %145 = vector.load %arg5[%c0_85, %c50] : memref<4x384xf32, #tpu.memory_space<vmem>>, vector<4x256xf32>
    %cst_86 = arith.constant 0.000000e+00 : f32
    %146 = vector.broadcast %cst_86 : f32 to vector<4x256xf32>
    %147 = arith.select %51, %145, %146 : vector<4x256xi1>, vector<4x256xf32>
    %c68 = arith.constant 68 : index
    %c0_87 = arith.constant 0 : index
    %148 = vector.load %arg6[%c68, %c0_87] : memref<100x256xf32, #tpu.memory_space<vmem>>, vector<4x256xf32>
    tpu.vector_store %arg6[%c68, %c0_87], %147 {strides = array<i32>} : memref<100x256xf32, #tpu.memory_space<vmem>>, vector<4x256xf32>,
    %c0_88 = arith.constant 0 : index
    %c51 = arith.constant 51 : index
    %149 = vector.load %arg5[%c0_88, %c51] : memref<4x384xf32, #tpu.memory_space<vmem>>, vector<4x256xf32>
    %cst_89 = arith.constant 0.000000e+00 : f32
    %150 = vector.broadcast %cst_89 : f32 to vector<4x256xf32>
    %151 = arith.select %62, %149, %150 : vector<4x256xi1>, vector<4x256xf32>
    %c72 = arith.constant 72 : index
    %c0_90 = arith.constant 0 : index
    %152 = vector.load %arg6[%c72, %c0_90] : memref<100x256xf32, #tpu.memory_space<vmem>>, vector<4x256xf32>
    tpu.vector_store %arg6[%c72, %c0_90], %151 {strides = array<i32>} : memref<100x256xf32, #tpu.memory_space<vmem>>, vector<4x256xf32>,
    %c0_91 = arith.constant 0 : index
    %c52_92 = arith.constant 52 : index
    %153 = vector.load %arg5[%c0_91, %c52_92] : memref<4x384xf32, #tpu.memory_space<vmem>>, vector<4x256xf32>
    %cst_93 = arith.constant 0.000000e+00 : f32
    %154 = vector.broadcast %cst_93 : f32 to vector<4x256xf32>
    %155 = arith.select %73, %153, %154 : vector<4x256xi1>, vector<4x256xf32>
    %c76 = arith.constant 76 : index
    %c0_94 = arith.constant 0 : index
    %156 = vector.load %arg6[%c76, %c0_94] : memref<100x256xf32, #tpu.memory_space<vmem>>, vector<4x256xf32>
    tpu.vector_store %arg6[%c76, %c0_94], %155 {strides = array<i32>} : memref<100x256xf32, #tpu.memory_space<vmem>>, vector<4x256xf32>,
    %c0_95 = arith.constant 0 : index
    %c64_96 = arith.constant 64 : index
    %157 = vector.load %arg5[%c0_95, %c64_96] : memref<4x384xf32, #tpu.memory_space<vmem>>, vector<4x256xf32>
    %cst_97 = arith.constant 0.000000e+00 : f32
    %158 = vector.broadcast %cst_97 : f32 to vector<4x256xf32>
    %159 = arith.select %29, %157, %158 : vector<4x256xi1>, vector<4x256xf32>
    %c80 = arith.constant 80 : index
    %c0_98 = arith.constant 0 : index
    %160 = vector.load %arg6[%c80, %c0_98] : memref<100x256xf32, #tpu.memory_space<vmem>>, vector<4x256xf32>
    tpu.vector_store %arg6[%c80, %c0_98], %159 {strides = array<i32>} : memref<100x256xf32, #tpu.memory_space<vmem>>, vector<4x256xf32>,
    %c0_99 = arith.constant 0 : index
    %c65 = arith.constant 65 : index
    %161 = vector.load %arg5[%c0_99, %c65] : memref<4x384xf32, #tpu.memory_space<vmem>>, vector<4x256xf32>
    %cst_100 = arith.constant 0.000000e+00 : f32
    %162 = vector.broadcast %cst_100 : f32 to vector<4x256xf32>
    %163 = arith.select %40, %161, %162 : vector<4x256xi1>, vector<4x256xf32>
    %c84 = arith.constant 84 : index
    %c0_101 = arith.constant 0 : index
    %164 = vector.load %arg6[%c84, %c0_101] : memref<100x256xf32, #tpu.memory_space<vmem>>, vector<4x256xf32>
    tpu.vector_store %arg6[%c84, %c0_101], %163 {strides = array<i32>} : memref<100x256xf32, #tpu.memory_space<vmem>>, vector<4x256xf32>,
    %c0_102 = arith.constant 0 : index
    %c66 = arith.constant 66 : index
    %165 = vector.load %arg5[%c0_102, %c66] : memref<4x384xf32, #tpu.memory_space<vmem>>, vector<4x256xf32>
    %cst_103 = arith.constant 0.000000e+00 : f32
    %166 = vector.broadcast %cst_103 : f32 to vector<4x256xf32>
    %167 = arith.select %51, %165, %166 : vector<4x256xi1>, vector<4x256xf32>
    %c88 = arith.constant 88 : index
    %c0_104 = arith.constant 0 : index
    %168 = vector.load %arg6[%c88, %c0_104] : memref<100x256xf32, #tpu.memory_space<vmem>>, vector<4x256xf32>
    tpu.vector_store %arg6[%c88, %c0_104], %167 {strides = array<i32>} : memref<100x256xf32, #tpu.memory_space<vmem>>, vector<4x256xf32>,
    %c0_105 = arith.constant 0 : index
    %c67 = arith.constant 67 : index
    %169 = vector.load %arg5[%c0_105, %c67] : memref<4x384xf32, #tpu.memory_space<vmem>>, vector<4x256xf32>
    %cst_106 = arith.constant 0.000000e+00 : f32
    %170 = vector.broadcast %cst_106 : f32 to vector<4x256xf32>
    %171 = arith.select %62, %169, %170 : vector<4x256xi1>, vector<4x256xf32>
    %c92 = arith.constant 92 : index
    %c0_107 = arith.constant 0 : index
    %172 = vector.load %arg6[%c92, %c0_107] : memref<100x256xf32, #tpu.memory_space<vmem>>, vector<4x256xf32>
    tpu.vector_store %arg6[%c92, %c0_107], %171 {strides = array<i32>} : memref<100x256xf32, #tpu.memory_space<vmem>>, vector<4x256xf32>,
    %c0_108 = arith.constant 0 : index
    %c68_109 = arith.constant 68 : index
    %173 = vector.load %arg5[%c0_108, %c68_109] : memref<4x384xf32, #tpu.memory_space<vmem>>, vector<4x256xf32>
    %cst_110 = arith.constant 0.000000e+00 : f32
    %174 = vector.broadcast %cst_110 : f32 to vector<4x256xf32>
    %175 = arith.select %73, %173, %174 : vector<4x256xi1>, vector<4x256xf32>
    %c96 = arith.constant 96 : index
    %c0_111 = arith.constant 0 : index
    %176 = vector.load %arg6[%c96, %c0_111] : memref<100x256xf32, #tpu.memory_space<vmem>>, vector<4x256xf32>
    tpu.vector_store %arg6[%c96, %c0_111], %175 {strides = array<i32>} : memref<100x256xf32, #tpu.memory_space<vmem>>, vector<4x256xf32>,
    %c0_112 = arith.constant 0 : index
    %c0_113 = arith.constant 0 : index
    %c0_114 = arith.constant 0 : index
    %177 = vector.load %arg2[%c0_112, %c0_113, %c0_114] : memref<2x4x100xf32, #tpu.memory_space<vmem>>, vector<1x4x100xf32>
    %178 = vector.shape_cast %177 : vector<1x4x100xf32> to vector<4x100xf32>
    %c0_115 = arith.constant 0 : index
    %c0_116 = arith.constant 0 : index
    %179 = vector.load %arg6[%c0_115, %c0_116] : memref<100x256xf32, #tpu.memory_space<vmem>>, vector<100x256xf32>
    %cst_117 = arith.constant dense<0.000000e+00> : vector<4x256xf32>
    %180 = tpu.matmul %178, %179, %cst_117 {dimension_numbers = #tpu.dot_dimension_numbers<[1], [0], [0], [1], [0, 0, 1, 1], [], []>} : vector<4x100xf32>, vector<100x256xf32>, vector<4x256xf32> -> vector<4x256xf32>
    %c0_118 = arith.constant 0 : index
    %c0_119 = arith.constant 0 : index
    %c0_120 = arith.constant 0 : index
    %181 = vector.load %arg3[%c0_118, %c0_119, %c0_120] : memref<2x4x1xf32, #tpu.memory_space<vmem>>, vector<1x4x1xf32>
    %182 = vector.shape_cast %181 : vector<1x4x1xf32> to vector<4x1xf32>
    %183 = vector.broadcast %182 : vector<4x1xf32> to vector<4x256xf32>
    %184 = arith.addf %180, %183 : vector<4x256xf32>
    %cst_121 = arith.constant 0.000000e+00 : f32
    %185 = vector.broadcast %cst_121 : f32 to vector<4x256xf32>
    %186 = arith.maximumf %184, %185 : vector<4x256xf32>
    %c0_122 = arith.constant 0 : index
    %c34_123 = arith.constant 34 : index
    %187 = vector.load %arg5[%c0_122, %c34_123] : memref<4x384xf32, #tpu.memory_space<vmem>>, vector<4x256xf32>
    tpu.vector_store %arg5[%c0_122, %c34_123], %186 {strides = array<i32>} : memref<4x384xf32, #tpu.memory_space<vmem>>, vector<4x256xf32>,
    %c0_124 = arith.constant 0 : index
    %c0_125 = arith.constant 0 : index
    %188 = vector.load %arg5[%c0_124, %c0_125] : memref<4x384xf32, #tpu.memory_space<vmem>>, vector<4x256xf32>
    %cst_126 = arith.constant 0.000000e+00 : f32
    %189 = vector.broadcast %cst_126 : f32 to vector<4x256xf32>
    %190 = arith.select %29, %188, %189 : vector<4x256xi1>, vector<4x256xf32>
    %c0_127 = arith.constant 0 : index
    %c0_128 = arith.constant 0 : index
    %191 = vector.load %arg6[%c0_127, %c0_128] : memref<100x256xf32, #tpu.memory_space<vmem>>, vector<4x256xf32>
    tpu.vector_store %arg6[%c0_127, %c0_128], %190 {strides = array<i32>} : memref<100x256xf32, #tpu.memory_space<vmem>>, vector<4x256xf32>,
    %c0_129 = arith.constant 0 : index
    %c1_130 = arith.constant 1 : index
    %192 = vector.load %arg5[%c0_129, %c1_130] : memref<4x384xf32, #tpu.memory_space<vmem>>, vector<4x256xf32>
    %cst_131 = arith.constant 0.000000e+00 : f32
    %193 = vector.broadcast %cst_131 : f32 to vector<4x256xf32>
    %194 = arith.select %40, %192, %193 : vector<4x256xi1>, vector<4x256xf32>
    %c4_132 = arith.constant 4 : index
    %c0_133 = arith.constant 0 : index
    %195 = vector.load %arg6[%c4_132, %c0_133] : memref<100x256xf32, #tpu.memory_space<vmem>>, vector<4x256xf32>
    tpu.vector_store %arg6[%c4_132, %c0_133], %194 {strides = array<i32>} : memref<100x256xf32, #tpu.memory_space<vmem>>, vector<4x256xf32>,
    %c0_134 = arith.constant 0 : index
    %c2_135 = arith.constant 2 : index
    %196 = vector.load %arg5[%c0_134, %c2_135] : memref<4x384xf32, #tpu.memory_space<vmem>>, vector<4x256xf32>
    %cst_136 = arith.constant 0.000000e+00 : f32
    %197 = vector.broadcast %cst_136 : f32 to vector<4x256xf32>
    %198 = arith.select %51, %196, %197 : vector<4x256xi1>, vector<4x256xf32>
    %c8_137 = arith.constant 8 : index
    %c0_138 = arith.constant 0 : index
    %199 = vector.load %arg6[%c8_137, %c0_138] : memref<100x256xf32, #tpu.memory_space<vmem>>, vector<4x256xf32>
    tpu.vector_store %arg6[%c8_137, %c0_138], %198 {strides = array<i32>} : memref<100x256xf32, #tpu.memory_space<vmem>>, vector<4x256xf32>,
    %c0_139 = arith.constant 0 : index
    %c3_140 = arith.constant 3 : index
    %200 = vector.load %arg5[%c0_139, %c3_140] : memref<4x384xf32, #tpu.memory_space<vmem>>, vector<4x256xf32>
    %cst_141 = arith.constant 0.000000e+00 : f32
    %201 = vector.broadcast %cst_141 : f32 to vector<4x256xf32>
    %202 = arith.select %62, %200, %201 : vector<4x256xi1>, vector<4x256xf32>
    %c12_142 = arith.constant 12 : index
    %c0_143 = arith.constant 0 : index
    %203 = vector.load %arg6[%c12_142, %c0_143] : memref<100x256xf32, #tpu.memory_space<vmem>>, vector<4x256xf32>
    tpu.vector_store %arg6[%c12_142, %c0_143], %202 {strides = array<i32>} : memref<100x256xf32, #tpu.memory_space<vmem>>, vector<4x256xf32>,
    %c0_144 = arith.constant 0 : index
    %c4_145 = arith.constant 4 : index
    %204 = vector.load %arg5[%c0_144, %c4_145] : memref<4x384xf32, #tpu.memory_space<vmem>>, vector<4x256xf32>
    %cst_146 = arith.constant 0.000000e+00 : f32
    %205 = vector.broadcast %cst_146 : f32 to vector<4x256xf32>
    %206 = arith.select %73, %204, %205 : vector<4x256xi1>, vector<4x256xf32>
    %c16_147 = arith.constant 16 : index
    %c0_148 = arith.constant 0 : index
    %207 = vector.load %arg6[%c16_147, %c0_148] : memref<100x256xf32, #tpu.memory_space<vmem>>, vector<4x256xf32>
    tpu.vector_store %arg6[%c16_147, %c0_148], %206 {strides = array<i32>} : memref<100x256xf32, #tpu.memory_space<vmem>>, vector<4x256xf32>,
    %c0_149 = arith.constant 0 : index
    %c16_150 = arith.constant 16 : index
    %208 = vector.load %arg5[%c0_149, %c16_150] : memref<4x384xf32, #tpu.memory_space<vmem>>, vector<4x256xf32>
    %cst_151 = arith.constant 0.000000e+00 : f32
    %209 = vector.broadcast %cst_151 : f32 to vector<4x256xf32>
    %210 = arith.select %29, %208, %209 : vector<4x256xi1>, vector<4x256xf32>
    %c20_152 = arith.constant 20 : index
    %c0_153 = arith.constant 0 : index
    %211 = vector.load %arg6[%c20_152, %c0_153] : memref<100x256xf32, #tpu.memory_space<vmem>>, vector<4x256xf32>
    tpu.vector_store %arg6[%c20_152, %c0_153], %210 {strides = array<i32>} : memref<100x256xf32, #tpu.memory_space<vmem>>, vector<4x256xf32>,
    %c0_154 = arith.constant 0 : index
    %c17_155 = arith.constant 17 : index
    %212 = vector.load %arg5[%c0_154, %c17_155] : memref<4x384xf32, #tpu.memory_space<vmem>>, vector<4x256xf32>
    %cst_156 = arith.constant 0.000000e+00 : f32
    %213 = vector.broadcast %cst_156 : f32 to vector<4x256xf32>
    %214 = arith.select %40, %212, %213 : vector<4x256xi1>, vector<4x256xf32>
    %c24_157 = arith.constant 24 : index
    %c0_158 = arith.constant 0 : index
    %215 = vector.load %arg6[%c24_157, %c0_158] : memref<100x256xf32, #tpu.memory_space<vmem>>, vector<4x256xf32>
    tpu.vector_store %arg6[%c24_157, %c0_158], %214 {strides = array<i32>} : memref<100x256xf32, #tpu.memory_space<vmem>>, vector<4x256xf32>,
    %c0_159 = arith.constant 0 : index
    %c18_160 = arith.constant 18 : index
    %216 = vector.load %arg5[%c0_159, %c18_160] : memref<4x384xf32, #tpu.memory_space<vmem>>, vector<4x256xf32>
    %cst_161 = arith.constant 0.000000e+00 : f32
    %217 = vector.broadcast %cst_161 : f32 to vector<4x256xf32>
    %218 = arith.select %51, %216, %217 : vector<4x256xi1>, vector<4x256xf32>
    %c28_162 = arith.constant 28 : index
    %c0_163 = arith.constant 0 : index
    %219 = vector.load %arg6[%c28_162, %c0_163] : memref<100x256xf32, #tpu.memory_space<vmem>>, vector<4x256xf32>
    tpu.vector_store %arg6[%c28_162, %c0_163], %218 {strides = array<i32>} : memref<100x256xf32, #tpu.memory_space<vmem>>, vector<4x256xf32>,
    %c0_164 = arith.constant 0 : index
    %c19_165 = arith.constant 19 : index
    %220 = vector.load %arg5[%c0_164, %c19_165] : memref<4x384xf32, #tpu.memory_space<vmem>>, vector<4x256xf32>
    %cst_166 = arith.constant 0.000000e+00 : f32
    %221 = vector.broadcast %cst_166 : f32 to vector<4x256xf32>
    %222 = arith.select %62, %220, %221 : vector<4x256xi1>, vector<4x256xf32>
    %c32_167 = arith.constant 32 : index
    %c0_168 = arith.constant 0 : index
    %223 = vector.load %arg6[%c32_167, %c0_168] : memref<100x256xf32, #tpu.memory_space<vmem>>, vector<4x256xf32>
    tpu.vector_store %arg6[%c32_167, %c0_168], %222 {strides = array<i32>} : memref<100x256xf32, #tpu.memory_space<vmem>>, vector<4x256xf32>,
    %c0_169 = arith.constant 0 : index
    %c20_170 = arith.constant 20 : index
    %224 = vector.load %arg5[%c0_169, %c20_170] : memref<4x384xf32, #tpu.memory_space<vmem>>, vector<4x256xf32>
    %cst_171 = arith.constant 0.000000e+00 : f32
    %225 = vector.broadcast %cst_171 : f32 to vector<4x256xf32>
    %226 = arith.select %73, %224, %225 : vector<4x256xi1>, vector<4x256xf32>
    %c36_172 = arith.constant 36 : index
    %c0_173 = arith.constant 0 : index
    %227 = vector.load %arg6[%c36_172, %c0_173] : memref<100x256xf32, #tpu.memory_space<vmem>>, vector<4x256xf32>
    tpu.vector_store %arg6[%c36_172, %c0_173], %226 {strides = array<i32>} : memref<100x256xf32, #tpu.memory_space<vmem>>, vector<4x256xf32>,
    %c0_174 = arith.constant 0 : index
    %c32_175 = arith.constant 32 : index
    %228 = vector.load %arg5[%c0_174, %c32_175] : memref<4x384xf32, #tpu.memory_space<vmem>>, vector<4x256xf32>
    %cst_176 = arith.constant 0.000000e+00 : f32
    %229 = vector.broadcast %cst_176 : f32 to vector<4x256xf32>
    %230 = arith.select %29, %228, %229 : vector<4x256xi1>, vector<4x256xf32>
    %c40_177 = arith.constant 40 : index
    %c0_178 = arith.constant 0 : index
    %231 = vector.load %arg6[%c40_177, %c0_178] : memref<100x256xf32, #tpu.memory_space<vmem>>, vector<4x256xf32>
    tpu.vector_store %arg6[%c40_177, %c0_178], %230 {strides = array<i32>} : memref<100x256xf32, #tpu.memory_space<vmem>>, vector<4x256xf32>,
    %c0_179 = arith.constant 0 : index
    %c33_180 = arith.constant 33 : index
    %232 = vector.load %arg5[%c0_179, %c33_180] : memref<4x384xf32, #tpu.memory_space<vmem>>, vector<4x256xf32>
    %cst_181 = arith.constant 0.000000e+00 : f32
    %233 = vector.broadcast %cst_181 : f32 to vector<4x256xf32>
    %234 = arith.select %40, %232, %233 : vector<4x256xi1>, vector<4x256xf32>
    %c44_182 = arith.constant 44 : index
    %c0_183 = arith.constant 0 : index
    %235 = vector.load %arg6[%c44_182, %c0_183] : memref<100x256xf32, #tpu.memory_space<vmem>>, vector<4x256xf32>
    tpu.vector_store %arg6[%c44_182, %c0_183], %234 {strides = array<i32>} : memref<100x256xf32, #tpu.memory_space<vmem>>, vector<4x256xf32>,
    %c0_184 = arith.constant 0 : index
    %c34_185 = arith.constant 34 : index
    %236 = vector.load %arg5[%c0_184, %c34_185] : memref<4x384xf32, #tpu.memory_space<vmem>>, vector<4x256xf32>
    %cst_186 = arith.constant 0.000000e+00 : f32
    %237 = vector.broadcast %cst_186 : f32 to vector<4x256xf32>
    %238 = arith.select %51, %236, %237 : vector<4x256xi1>, vector<4x256xf32>
    %c48_187 = arith.constant 48 : index
    %c0_188 = arith.constant 0 : index
    %239 = vector.load %arg6[%c48_187, %c0_188] : memref<100x256xf32, #tpu.memory_space<vmem>>, vector<4x256xf32>
    tpu.vector_store %arg6[%c48_187, %c0_188], %238 {strides = array<i32>} : memref<100x256xf32, #tpu.memory_space<vmem>>, vector<4x256xf32>,
    %c0_189 = arith.constant 0 : index
    %c35_190 = arith.constant 35 : index
    %240 = vector.load %arg5[%c0_189, %c35_190] : memref<4x384xf32, #tpu.memory_space<vmem>>, vector<4x256xf32>
    %cst_191 = arith.constant 0.000000e+00 : f32
    %241 = vector.broadcast %cst_191 : f32 to vector<4x256xf32>
    %242 = arith.select %62, %240, %241 : vector<4x256xi1>, vector<4x256xf32>
    %c52_192 = arith.constant 52 : index
    %c0_193 = arith.constant 0 : index
    %243 = vector.load %arg6[%c52_192, %c0_193] : memref<100x256xf32, #tpu.memory_space<vmem>>, vector<4x256xf32>
    tpu.vector_store %arg6[%c52_192, %c0_193], %242 {strides = array<i32>} : memref<100x256xf32, #tpu.memory_space<vmem>>, vector<4x256xf32>,
    %c0_194 = arith.constant 0 : index
    %c36_195 = arith.constant 36 : index
    %244 = vector.load %arg5[%c0_194, %c36_195] : memref<4x384xf32, #tpu.memory_space<vmem>>, vector<4x256xf32>
    %cst_196 = arith.constant 0.000000e+00 : f32
    %245 = vector.broadcast %cst_196 : f32 to vector<4x256xf32>
    %246 = arith.select %73, %244, %245 : vector<4x256xi1>, vector<4x256xf32>
    %c56_197 = arith.constant 56 : index
    %c0_198 = arith.constant 0 : index
    %247 = vector.load %arg6[%c56_197, %c0_198] : memref<100x256xf32, #tpu.memory_space<vmem>>, vector<4x256xf32>
    tpu.vector_store %arg6[%c56_197, %c0_198], %246 {strides = array<i32>} : memref<100x256xf32, #tpu.memory_space<vmem>>, vector<4x256xf32>,
    %c0_199 = arith.constant 0 : index
    %c48_200 = arith.constant 48 : index
    %248 = vector.load %arg5[%c0_199, %c48_200] : memref<4x384xf32, #tpu.memory_space<vmem>>, vector<4x256xf32>
    %cst_201 = arith.constant 0.000000e+00 : f32
    %249 = vector.broadcast %cst_201 : f32 to vector<4x256xf32>
    %250 = arith.select %29, %248, %249 : vector<4x256xi1>, vector<4x256xf32>
    %c60_202 = arith.constant 60 : index
    %c0_203 = arith.constant 0 : index
    %251 = vector.load %arg6[%c60_202, %c0_203] : memref<100x256xf32, #tpu.memory_space<vmem>>, vector<4x256xf32>
    tpu.vector_store %arg6[%c60_202, %c0_203], %250 {strides = array<i32>} : memref<100x256xf32, #tpu.memory_space<vmem>>, vector<4x256xf32>,
    %c0_204 = arith.constant 0 : index
    %c49_205 = arith.constant 49 : index
    %252 = vector.load %arg5[%c0_204, %c49_205] : memref<4x384xf32, #tpu.memory_space<vmem>>, vector<4x256xf32>
    %cst_206 = arith.constant 0.000000e+00 : f32
    %253 = vector.broadcast %cst_206 : f32 to vector<4x256xf32>
    %254 = arith.select %40, %252, %253 : vector<4x256xi1>, vector<4x256xf32>
    %c64_207 = arith.constant 64 : index
    %c0_208 = arith.constant 0 : index
    %255 = vector.load %arg6[%c64_207, %c0_208] : memref<100x256xf32, #tpu.memory_space<vmem>>, vector<4x256xf32>
    tpu.vector_store %arg6[%c64_207, %c0_208], %254 {strides = array<i32>} : memref<100x256xf32, #tpu.memory_space<vmem>>, vector<4x256xf32>,
    %c0_209 = arith.constant 0 : index
    %c50_210 = arith.constant 50 : index
    %256 = vector.load %arg5[%c0_209, %c50_210] : memref<4x384xf32, #tpu.memory_space<vmem>>, vector<4x256xf32>
    %cst_211 = arith.constant 0.000000e+00 : f32
    %257 = vector.broadcast %cst_211 : f32 to vector<4x256xf32>
    %258 = arith.select %51, %256, %257 : vector<4x256xi1>, vector<4x256xf32>
    %c68_212 = arith.constant 68 : index
    %c0_213 = arith.constant 0 : index
    %259 = vector.load %arg6[%c68_212, %c0_213] : memref<100x256xf32, #tpu.memory_space<vmem>>, vector<4x256xf32>
    tpu.vector_store %arg6[%c68_212, %c0_213], %258 {strides = array<i32>} : memref<100x256xf32, #tpu.memory_space<vmem>>, vector<4x256xf32>,
    %c0_214 = arith.constant 0 : index
    %c51_215 = arith.constant 51 : index
    %260 = vector.load %arg5[%c0_214, %c51_215] : memref<4x384xf32, #tpu.memory_space<vmem>>, vector<4x256xf32>
    %cst_216 = arith.constant 0.000000e+00 : f32
    %261 = vector.broadcast %cst_216 : f32 to vector<4x256xf32>
    %262 = arith.select %62, %260, %261 : vector<4x256xi1>, vector<4x256xf32>
    %c72_217 = arith.constant 72 : index
    %c0_218 = arith.constant 0 : index
    %263 = vector.load %arg6[%c72_217, %c0_218] : memref<100x256xf32, #tpu.memory_space<vmem>>, vector<4x256xf32>
    tpu.vector_store %arg6[%c72_217, %c0_218], %262 {strides = array<i32>} : memref<100x256xf32, #tpu.memory_space<vmem>>, vector<4x256xf32>,
    %c0_219 = arith.constant 0 : index
    %c52_220 = arith.constant 52 : index
    %264 = vector.load %arg5[%c0_219, %c52_220] : memref<4x384xf32, #tpu.memory_space<vmem>>, vector<4x256xf32>
    %cst_221 = arith.constant 0.000000e+00 : f32
    %265 = vector.broadcast %cst_221 : f32 to vector<4x256xf32>
    %266 = arith.select %73, %264, %265 : vector<4x256xi1>, vector<4x256xf32>
    %c76_222 = arith.constant 76 : index
    %c0_223 = arith.constant 0 : index
    %267 = vector.load %arg6[%c76_222, %c0_223] : memref<100x256xf32, #tpu.memory_space<vmem>>, vector<4x256xf32>
    tpu.vector_store %arg6[%c76_222, %c0_223], %266 {strides = array<i32>} : memref<100x256xf32, #tpu.memory_space<vmem>>, vector<4x256xf32>,
    %c0_224 = arith.constant 0 : index
    %c64_225 = arith.constant 64 : index
    %268 = vector.load %arg5[%c0_224, %c64_225] : memref<4x384xf32, #tpu.memory_space<vmem>>, vector<4x256xf32>
    %cst_226 = arith.constant 0.000000e+00 : f32
    %269 = vector.broadcast %cst_226 : f32 to vector<4x256xf32>
    %270 = arith.select %29, %268, %269 : vector<4x256xi1>, vector<4x256xf32>
    %c80_227 = arith.constant 80 : index
    %c0_228 = arith.constant 0 : index
    %271 = vector.load %arg6[%c80_227, %c0_228] : memref<100x256xf32, #tpu.memory_space<vmem>>, vector<4x256xf32>
    tpu.vector_store %arg6[%c80_227, %c0_228], %270 {strides = array<i32>} : memref<100x256xf32, #tpu.memory_space<vmem>>, vector<4x256xf32>,
    %c0_229 = arith.constant 0 : index
    %c65_230 = arith.constant 65 : index
    %272 = vector.load %arg5[%c0_229, %c65_230] : memref<4x384xf32, #tpu.memory_space<vmem>>, vector<4x256xf32>
    %cst_231 = arith.constant 0.000000e+00 : f32
    %273 = vector.broadcast %cst_231 : f32 to vector<4x256xf32>
    %274 = arith.select %40, %272, %273 : vector<4x256xi1>, vector<4x256xf32>
    %c84_232 = arith.constant 84 : index
    %c0_233 = arith.constant 0 : index
    %275 = vector.load %arg6[%c84_232, %c0_233] : memref<100x256xf32, #tpu.memory_space<vmem>>, vector<4x256xf32>
    tpu.vector_store %arg6[%c84_232, %c0_233], %274 {strides = array<i32>} : memref<100x256xf32, #tpu.memory_space<vmem>>, vector<4x256xf32>,
    %c0_234 = arith.constant 0 : index
    %c66_235 = arith.constant 66 : index
    %276 = vector.load %arg5[%c0_234, %c66_235] : memref<4x384xf32, #tpu.memory_space<vmem>>, vector<4x256xf32>
    %cst_236 = arith.constant 0.000000e+00 : f32
    %277 = vector.broadcast %cst_236 : f32 to vector<4x256xf32>
    %278 = arith.select %51, %276, %277 : vector<4x256xi1>, vector<4x256xf32>
    %c88_237 = arith.constant 88 : index
    %c0_238 = arith.constant 0 : index
    %279 = vector.load %arg6[%c88_237, %c0_238] : memref<100x256xf32, #tpu.memory_space<vmem>>, vector<4x256xf32>
    tpu.vector_store %arg6[%c88_237, %c0_238], %278 {strides = array<i32>} : memref<100x256xf32, #tpu.memory_space<vmem>>, vector<4x256xf32>,
    %c0_239 = arith.constant 0 : index
    %c67_240 = arith.constant 67 : index
    %280 = vector.load %arg5[%c0_239, %c67_240] : memref<4x384xf32, #tpu.memory_space<vmem>>, vector<4x256xf32>
    %cst_241 = arith.constant 0.000000e+00 : f32
    %281 = vector.broadcast %cst_241 : f32 to vector<4x256xf32>
    %282 = arith.select %62, %280, %281 : vector<4x256xi1>, vector<4x256xf32>
    %c92_242 = arith.constant 92 : index
    %c0_243 = arith.constant 0 : index
    %283 = vector.load %arg6[%c92_242, %c0_243] : memref<100x256xf32, #tpu.memory_space<vmem>>, vector<4x256xf32>
    tpu.vector_store %arg6[%c92_242, %c0_243], %282 {strides = array<i32>} : memref<100x256xf32, #tpu.memory_space<vmem>>, vector<4x256xf32>,
    %c0_244 = arith.constant 0 : index
    %c68_245 = arith.constant 68 : index
    %284 = vector.load %arg5[%c0_244, %c68_245] : memref<4x384xf32, #tpu.memory_space<vmem>>, vector<4x256xf32>
    %cst_246 = arith.constant 0.000000e+00 : f32
    %285 = vector.broadcast %cst_246 : f32 to vector<4x256xf32>
    %286 = arith.select %73, %284, %285 : vector<4x256xi1>, vector<4x256xf32>
    %c96_247 = arith.constant 96 : index
    %c0_248 = arith.constant 0 : index
    %287 = vector.load %arg6[%c96_247, %c0_248] : memref<100x256xf32, #tpu.memory_space<vmem>>, vector<4x256xf32>
    tpu.vector_store %arg6[%c96_247, %c0_248], %286 {strides = array<i32>} : memref<100x256xf32, #tpu.memory_space<vmem>>, vector<4x256xf32>,
    %c1_249 = arith.constant 1 : index
    %c0_250 = arith.constant 0 : index
    %c0_251 = arith.constant 0 : index
    %288 = vector.load %arg2[%c1_249, %c0_250, %c0_251] : memref<2x4x100xf32, #tpu.memory_space<vmem>>, vector<1x4x100xf32>
    %289 = vector.shape_cast %288 : vector<1x4x100xf32> to vector<4x100xf32>
    %c0_252 = arith.constant 0 : index
    %c0_253 = arith.constant 0 : index
    %290 = vector.load %arg6[%c0_252, %c0_253] : memref<100x256xf32, #tpu.memory_space<vmem>>, vector<100x256xf32>
    %cst_254 = arith.constant dense<0.000000e+00> : vector<4x256xf32>
    %291 = tpu.matmul %289, %290, %cst_254 {dimension_numbers = #tpu.dot_dimension_numbers<[1], [0], [0], [1], [0, 0, 1, 1], [], []>} : vector<4x100xf32>, vector<100x256xf32>, vector<4x256xf32> -> vector<4x256xf32>
    %c1_255 = arith.constant 1 : index
    %c0_256 = arith.constant 0 : index
    %c0_257 = arith.constant 0 : index
    %292 = vector.load %arg3[%c1_255, %c0_256, %c0_257] : memref<2x4x1xf32, #tpu.memory_space<vmem>>, vector<1x4x1xf32>
    %293 = vector.shape_cast %292 : vector<1x4x1xf32> to vector<4x1xf32>
    %294 = vector.broadcast %293 : vector<4x1xf32> to vector<4x256xf32>
    %295 = arith.addf %291, %294 : vector<4x256xf32>
    %cst_258 = arith.constant 0.000000e+00 : f32
    %296 = vector.broadcast %cst_258 : f32 to vector<4x256xf32>
    %297 = arith.maximumf %295, %296 : vector<4x256xf32>
    %c0_259 = arith.constant 0 : index
    %c0_260 = arith.constant 0 : index
    %c0_261 = arith.constant 0 : index
    %298 = vector.load %arg4[%c0_259, %c0_260, %c0_261] : memref<1x4x256xf32, #tpu.memory_space<vmem>>, vector<1x4x256xf32>
    %299 = vector.shape_cast %298 : vector<1x4x256xf32> to vector<4x256xf32>
    %300 = vector.shape_cast %297 : vector<4x256xf32> to vector<1x4x256xf32>
    tpu.vector_store %arg4[%c0_259, %c0_260, %c0_261], %300 {strides = array<i32>} : memref<1x4x256xf32, #tpu.memory_space<vmem>>, vector<1x4x256xf32>,
    return
  }
  func.func @transform_0(%arg0: i32) -> (i32, i32, i32) {
    %c0_i32 = arith.constant 0 : i32
    %c0_i32_0 = arith.constant 0 : i32
    %c0_i32_1 = arith.constant 0 : i32
    return %arg0, %c0_i32, %c0_i32_0 : i32, i32, i32
  }
  func.func @transform_1(%arg0: i32) -> (i32, i32, i32) {
    %c0_i32 = arith.constant 0 : i32
    %c0_i32_0 = arith.constant 0 : i32
    %c0_i32_1 = arith.constant 0 : i32
    %c0_i32_2 = arith.constant 0 : i32
    return %c0_i32, %c0_i32_0, %c0_i32_1 : i32, i32, i32
  }
  func.func @transform_2(%arg0: i32) -> (i32, i32, i32) {
    %c0_i32 = arith.constant 0 : i32
    %c0_i32_0 = arith.constant 0 : i32
    %c0_i32_1 = arith.constant 0 : i32
    %c0_i32_2 = arith.constant 0 : i32
    return %c0_i32, %c0_i32_0, %c0_i32_1 : i32, i32, i32
  }
  func.func @transform_3(%arg0: i32) -> (i32, i32, i32) {
    %c0_i32 = arith.constant 0 : i32
    %c0_i32_0 = arith.constant 0 : i32
    %c0_i32_1 = arith.constant 0 : i32
    return %arg0, %c0_i32, %c0_i32_0 : i32, i32, i32
  }
}

</mosaic_0001>

<llo_original>
// kernel: attention_model_forward.1
$region0: #{attention_model_forward.1}
  #allocation0 [shape = 'u32[]', space=smem, size = 0x4, offset = 0x4, fixed_abs, tag = 'smem constant byte address 0x4 - core index']
  #allocation1 [shape = 'u32[144,128]{1,0:T(1,128)}', space=vmem, size = 0x12000, scoped, tag = 'internal scratch']
  #allocation2 [shape = 'f32[4,384]{1,0:T(4,128)}', space=vmem, size = 0x1800, scoped, tag = 'scratch operand']
  #allocation3 [shape = 'f32[100,256]{1,0:T(8,128)}', space=vmem, size = 0x1a000, scoped, tag = 'scratch operand']
  %s0 = inlined_call_operand.vmem [shape: f32[2,4,256], index: 0, kind: input, shape index: {}]
  %s1 = inlined_call_operand.vmem [shape: f32[2,4,100], index: 1, kind: input, shape index: {}]
  %s2 = inlined_call_operand.vmem [shape: f32[2,4,1], index: 2, kind: input, shape index: {}]
  %s3 = inlined_call_operand.vmem [shape: f32[2,4,256], index: 3, kind: output, shape index: {}]
  %s4 = sld [smem:[#allocation0]]
  $region45: #{attention_model_forward.1} parent=0
    _
  %s6 = ssub.s32 1, %s4
  %s7 = scalar_select 0, %s6, %s4
  loop: start=0, step=1, limit=4
  $region2: #{attention_model_forward.1} parent=0 // loop_pre_header
    _
  $region3: #{attention_model_forward.1} parent=0 // loop_header
    %s9 = sphi 0, %s13
    %p10 = scmp.ge.s32.totalorder %s9, 4
    %s19 = sphi 0, %s21
    %s22 = sphi 0, %s19
    %s23 = sphi 0, %s22
    %s39 = sphi 0, %s23
    %s43 = sphi 0, %s43
    %s45 = sphi 0, %s43
    %s46 = sphi 0, %s45
    %s60 = sphi 0, %s46
    %s64 = sphi 0, %s64
    %s66 = sphi 0, %s64
    %s67 = sphi 0, %s66
    %s81 = sphi 0, %s67
    %s87 = sphi 0, %s89
    %s90 = sphi 0, %s87
    %s91 = sphi 0, %s90
    %s107 = sphi 0, %s91
  $region4: #{attention_model_forward.1} parent=0 // loop_header_branch
    %12 = sbr.rel (%p10) target = $region8
  $region5: #{attention_model_forward.1} parent=0 // loop_body
    %s14 = ssub.s32 %s9, 1
    %s15 = ssub.s32 %s9, 2
    %s16 = sadd.s32 %s9, 1
    %s17 = ssub.s32 %s9, %s16
    %p18 = scmp.eq.s32.totalorder %s17, 0
    %s20 = sadd.s32 %s19, 1
    %s21 = scalar_select %p18, %s19, %s20
    %p24 = pneg %p18
    %p25 = scmp.eq.s32.totalorder %s9, 1
    %p26 = por %p24, %p25
    %p27 = scmp.ne.s32.totalorder %s19, %s22
    %p28 = scmp.eq.s32.totalorder %s9, 0
    %p29 = por %p27, %p28
    %p30 = scmp.ne.s32.totalorder %s19, %s22
    %p31 = scmp.eq.s32.totalorder %s14, 1
    %p32 = por %p30, %p31
    %p33 = scmp.ne.s32.totalorder %s22, %s23
    %p34 = scmp.eq.s32.totalorder %s14, 0
    %p35 = por %p33, %p34
    %p36 = scmp.ne.s32.totalorder %s22, %s23
    %p37 = scmp.eq.s32.totalorder %s15, 1
    %p38 = por %p36, %p37
    %p40 = scmp.ne.s32.totalorder %s23, %s39
    %p41 = scmp.eq.s32.totalorder %s15, 0
    %p42 = por %p40, %p41
    %s44 = sadd.s32 %s43, 1
    %p47 = scmp.eq.s32.totalorder %s9, 1
    %p48 = scmp.ne.s32.totalorder %s43, %s45
    %p49 = scmp.eq.s32.totalorder %s9, 0
    %p50 = por %p48, %p49
    %p51 = scmp.ne.s32.totalorder %s43, %s45
    %p52 = scmp.eq.s32.totalorder %s14, 1
    %p53 = por %p51, %p52
    %p54 = scmp.ne.s32.totalorder %s45, %s46
    %p55 = scmp.eq.s32.totalorder %s14, 0
    %p56 = por %p54, %p55
    %p57 = scmp.ne.s32.totalorder %s45, %s46
    %p58 = scmp.eq.s32.totalorder %s15, 1
    %p59 = por %p57, %p58
    %p61 = scmp.ne.s32.totalorder %s46, %s60
    %p62 = scmp.eq.s32.totalorder %s15, 0
    %p63 = por %p61, %p62
    %s65 = sadd.s32 %s64, 1
    %p68 = scmp.eq.s32.totalorder %s9, 1
    %p69 = scmp.ne.s32.totalorder %s64, %s66
    %p70 = scmp.eq.s32.totalorder %s9, 0
    %p71 = por %p69, %p70
    %p72 = scmp.ne.s32.totalorder %s64, %s66
    %p73 = scmp.eq.s32.totalorder %s14, 1
    %p74 = por %p72, %p73
    %p75 = scmp.ne.s32.totalorder %s66, %s67
    %p76 = scmp.eq.s32.totalorder %s14, 0
    %p77 = por %p75, %p76
    %p78 = scmp.ne.s32.totalorder %s66, %s67
    %p79 = scmp.eq.s32.totalorder %s15, 1
    %p80 = por %p78, %p79
    %p82 = scmp.ne.s32.totalorder %s67, %s81
    %p83 = scmp.eq.s32.totalorder %s15, 0
    %p84 = por %p82, %p83
    %s85 = ssub.s32 %s9, %s16
    %p86 = scmp.eq.s32.totalorder %s85, 0
    %s88 = sadd.s32 %s87, 1
    %s89 = scalar_select %p86, %s87, %s88
    %p92 = pneg %p86
    %p93 = scmp.eq.s32.totalorder %s9, 1
    %p94 = por %p92, %p93
    %p95 = scmp.ne.s32.totalorder %s87, %s90
    %p96 = scmp.eq.s32.totalorder %s9, 0
    %p97 = por %p95, %p96
    %p98 = scmp.ne.s32.totalorder %s87, %s90
    %p99 = scmp.eq.s32.totalorder %s14, 1
    %p100 = por %p98, %p99
    %p101 = scmp.ne.s32.totalorder %s90, %s91
    %p102 = scmp.eq.s32.totalorder %s14, 0
    %p103 = por %p101, %p102
    %p104 = scmp.ne.s32.totalorder %s90, %s91
    %p105 = scmp.eq.s32.totalorder %s15, 1
    %p106 = por %p104, %p105
    %p108 = scmp.ne.s32.totalorder %s91, %s107
    %p109 = scmp.eq.s32.totalorder %s15, 0
    %p110 = por %p108, %p109
    %p111 = scmp.le.s32.totalorder 1, %s9
    %p112 = scmp.lt.s32.totalorder %s9, 3
    %p113 = pnand %p111, %p112
    %p114 = pneg %p113
    // Predicated region
    $region9: #{attention_model_forward.1} parent=5 // pred_check
      _
    $region10: #{attention_model_forward.1} parent=5 // pred_check_branch
      %116 = sbr.rel (%p113) target = $region12
    $region11: #{attention_model_forward.1} parent=5 // pred_region
      %s117 = ssub.s32 %s9, 1
      // Predicated region
      $region13: #{attention_model_forward.1} parent=11 // pred_check
        %p118 = pneg %p56
      $region14: #{attention_model_forward.1} parent=11 // pred_check_branch
        %120 = sbr.rel (%p118) target = $region16
      $region15: #{attention_model_forward.1} parent=11 // pred_region
        _
      $region16: #{attention_model_forward.1} parent=11 // pred_fallthru
        _
      // Predicated region
      $region17: #{attention_model_forward.1} parent=11 // pred_check
        %p121 = pneg %p77
      $region18: #{attention_model_forward.1} parent=11 // pred_check_branch
        %123 = sbr.rel (%p121) target = $region20
      $region19: #{attention_model_forward.1} parent=11 // pred_region
        _
      $region20: #{attention_model_forward.1} parent=11 // pred_fallthru
        _
    $region12: #{attention_model_forward.1} parent=5 // pred_fallthru
      _
    %p124 = scmp.lt.s32.totalorder %s9, 2
    // Predicated region
    $region21: #{attention_model_forward.1} parent=5 // pred_check
      %p125 = pneg %p124
    $region22: #{attention_model_forward.1} parent=5 // pred_check_branch
      %127 = sbr.rel (%p125) target = $region24
    $region23: #{attention_model_forward.1} parent=5 // pred_region
      // Predicated region
      $region25: #{attention_model_forward.1} parent=23 // pred_check
        %p128 = pneg %p29
      $region26: #{attention_model_forward.1} parent=23 // pred_check_branch
        %130 = sbr.rel (%p128) target = $region28
      $region27: #{attention_model_forward.1} parent=23 // pred_region
        %p131 = scmp.lt.s32.totalorder %s9, 1
        %s132 = scalar_select %p131, %s9, 1
        %s133 = smul.addr %s132, 2
        %s134 = smul.addr %s133, 4
        %s135 = scalar_lea.vmem %s0, %s134
      $region28: #{attention_model_forward.1} parent=23 // pred_fallthru
        _
    $region24: #{attention_model_forward.1} parent=5 // pred_fallthru
      _
    %p136 = scmp.le.s32.totalorder 1, %s9
    %p137 = scmp.lt.s32.totalorder %s9, 3
    %p138 = pnand %p136, %p137
    %p139 = pneg %p138
    // Predicated region
    $region29: #{attention_model_forward.1} parent=5 // pred_check
      _
    $region30: #{attention_model_forward.1} parent=5 // pred_check_branch
      %141 = sbr.rel (%p138) target = $region32
    $region31: #{attention_model_forward.1} parent=5 // pred_region
      %s142 = ssub.s32 %s9, 1
      %p143 = scmp.lt.s32.totalorder %s14, 1
      %s144 = scalar_select %p143, %s14, 1
      %s145 = smul.addr %s144, 2
      %s146 = smul.addr %s145, 4
      %s147 = scalar_lea.vmem %s0, %s146
      %p148 = pneg %p35
      %p149 = pneg %p32
      %p150 = pneg %p56
      %p151 = pneg %p53
      %p152 = pneg %p77
      %p153 = pneg %p74
      %p154 = pneg %p103
      %p155 = pneg %p100
      %p156 = scmp.lt.s32.totalorder %s14, 1
      %s157 = scalar_select %p156, %s14, 1
      %s158 = smul.addr %s157, 2
      %s159 = smul.addr %s158, 4
      %s160 = scalar_lea.vmem %s3, %s159
      %p161 = scmp.lt.s32.totalorder %s14, 1
      %s162 = scalar_select %p161, %s14, 1
      %s163 = smul.addr %s162, 2
      %s164 = smul.addr %s163, 4
      %s165 = scalar_lea.vmem %s0, %s164
      %p166 = scmp.lt.s32.totalorder %s14, 1
      %s167 = scalar_select %p166, %s14, 1
      %s168 = smul.addr %s167, 2
      %s169 = smul.addr %s168, 4
      %s170 = scalar_lea.vmem %s3, %s169
      %171 = vst [vmem:[#allocation2] sm:$0xff] 0.0
      %172 = vst [vmem:[#allocation2 + $0x8] sm:$0xf] 0.0
      %v173 = vlaneseq
      %v174 = vand.u32 %v173, 127
      %v175 = vadd.s32 %v174, 128
      %vm176 = vcmp.lt.s32.totalorder %v174, 0
      %v177 = vsub.s32 0, %v174
      %v178 = vsel %vm176, %v177, %v174
      %v179 = vshrl.u32 %v178, 4
      %v180 = vand.u32 %v178, 15
      %v181 = vsub.s32 0, %v180
      %v182 = vsel %vm176, %v181, %v180
      %vm183 = vcmp.lt.s32.totalorder %v175, 0
      %v184 = vsub.s32 0, %v175
      %v185 = vsel %vm183, %v184, %v175
      %v186 = vshrl.u32 %v185, 4
      %v187 = vand.u32 %v185, 15
      %v188 = vsub.s32 0, %v187
      %v189 = vsel %vm183, %v188, %v187
      %vm190 = vcmp.ne.s32.totalorder %v182, 0
      %vm191 = vcmp.ne.s32.totalorder %v189, 0
      %vm192 = vcmp.lt.s32.totalorder %v182, 0
      %vm193 = vcmp.lt.s32.totalorder %v189, 0
      %vm194 = vmand %vm192, %vm190
      %vm195 = vmand %vm193, %vm191
      %v196 = vadd.s32 %v182, 16
      %v197 = vadd.s32 %v189, 16
      %v198 = vsel %vm194, %v196, %v182
      %v199 = vsel %vm195, %v197, %v189
      %v200 = vadd.s32 %v198, 4294967294
      %v201 = vadd.s32 %v199, 4294967294
      %vm202 = vcmp.ge.s32.totalorder %v200, 0
      %vm203 = vcmp.ge.s32.totalorder %v201, 0
      %vm204 = vcmp.lt.s32.totalorder %v200, 16
      %vm205 = vcmp.lt.s32.totalorder %v201, 16
      %vm206 = vmand %vm202, %vm204
      %vm207 = vmand %vm203, %vm205
      %v208 = vsel %vm206, 1, 0
      %v209 = vsel %vm207, 1, 0
      %vm210 = vcmp.eq.s32.totalorder %v208, 1
      %vm211 = vcmp.eq.s32.totalorder %v209, 1
      %v212 = vadd.s32 %v198, 4294967295
      %v213 = vadd.s32 %v199, 4294967295
      %vm214 = vcmp.ge.s32.totalorder %v212, 0
      %vm215 = vcmp.ge.s32.totalorder %v213, 0
      %vm216 = vcmp.lt.s32.totalorder %v212, 16
      %vm217 = vcmp.lt.s32.totalorder %v213, 16
      %vm218 = vmand %vm214, %vm216
      %vm219 = vmand %vm215, %vm217
      %v220 = vsel %vm218, 1, 0
      %v221 = vsel %vm219, 1, 0
      %vm222 = vcmp.eq.s32.totalorder %v220, 1
      %vm223 = vcmp.eq.s32.totalorder %v221, 1
      %vm224 = vcmp.ge.s32.totalorder %v198, 0
      %vm225 = vcmp.ge.s32.totalorder %v199, 0
      %vm226 = vcmp.lt.s32.totalorder %v198, 16
      %vm227 = vcmp.lt.s32.totalorder %v199, 16
      %vm228 = vmand %vm224, %vm226
      %vm229 = vmand %vm225, %vm227
      %v230 = vsel %vm228, 1, 0
      %v231 = vsel %vm229, 1, 0
      %vm232 = vcmp.eq.s32.totalorder %v230, 1
      %vm233 = vcmp.eq.s32.totalorder %v231, 1
      %v234 = vadd.s32 %v198, 1
      %v235 = vadd.s32 %v199, 1
      %vm236 = vcmp.ge.s32.totalorder %v234, 0
      %vm237 = vcmp.ge.s32.totalorder %v235, 0
      %vm238 = vcmp.lt.s32.totalorder %v234, 16
      %vm239 = vcmp.lt.s32.totalorder %v235, 16
      %vm240 = vmand %vm236, %vm238
      %vm241 = vmand %vm237, %vm239
      %v242 = vsel %vm240, 1, 0
      %v243 = vsel %vm241, 1, 0
      %vm244 = vcmp.eq.s32.totalorder %v242, 1
      %vm245 = vcmp.eq.s32.totalorder %v243, 1
      %v246 = vadd.s32 %v198, 2
      %v247 = vadd.s32 %v199, 2
      %vm248 = vcmp.ge.s32.totalorder %v246, 0
      %vm249 = vcmp.ge.s32.totalorder %v247, 0
      %vm250 = vcmp.lt.s32.totalorder %v246, 16
      %vm251 = vcmp.lt.s32.totalorder %v247, 16
      %vm252 = vmand %vm248, %vm250
      %vm253 = vmand %vm249, %vm251
      %v254 = vsel %vm252, 1, 0
      %v255 = vsel %vm253, 1, 0
      %vm256 = vcmp.eq.s32.totalorder %v254, 1
      %vm257 = vcmp.eq.s32.totalorder %v255, 1
      %v258 = vld [vmem:[%s165] sm:$0xff]
      %260 = vrot.lane.b32.xlu0 %v258, 34
      %v261 = vpop.permute.xlu0 %260
      %v262 = vrot.slane %v261, 4
      %vm263 = vcmask 277504
      %v264 = vsel %vm263, %v262, %v261
      %vm267 = vcmask 1043728
      %vm268 = vcmask 1047556
      %vm269 = vmor %vm268, %vm267
      %270 = vst.msk [vmem:[#allocation2] sm:$0xff] %vm269, %v264
      %vm271 = vcmask 273408
      %272 = vst.msk [vmem:[#allocation2 + $0x8] sm:$0xf] %vm271, %v262
      %v273 = vld [vmem:[#allocation2] sm:$0xff]
      %v275 = vcombine.high %v273, %v273
      %v277 = vsel %vm210, %v273, 0.0
      %v278 = vsel %vm211, %v275, 0.0
      %279 = vst [vmem:[#allocation3] sm:$0xf] %v277
      %280 = vst [vmem:[#allocation3 + $0x8] sm:$0xf] %v278
      %v281 = vld [vmem:[#allocation2] sm:$0xff]
      %v282 = vld [vmem:[#allocation2 + $0x8] sm:$0xf]
      %v285 = vcombine.high %v281, %v281
      %286 = vrot.lane.b32.xlu0 %v281, 127
      %v287 = vpop.permute.xlu0 %286
      %288 = vrot.lane.b32.xlu0 %v285, 127
      %v289 = vpop.permute.xlu0 %288
      %290 = vrot.lane.b32.xlu0 %v282, 127
      %v291 = vpop.permute.xlu0 %290
      %vm292 = vcmask 1039360
      %v293 = vsel %vm292, %v287, %v289
      %v294 = vsel %vm292, %v289, %v291
      %v297 = vsel %vm222, %v293, 0.0
      %v298 = vsel %vm223, %v294, 0.0
      %v301 = vrot.slane %v297, 4
      %v302 = vrot.slane %v298, 4
      %305 = vst [vmem:[#allocation3] sm:$0xf0] %v301
      %306 = vst [vmem:[#allocation3 + $0x8] sm:$0xf0] %v302
      %v307 = vld [vmem:[#allocation2] sm:$0xff]
      %v308 = vld [vmem:[#allocation2 + $0x8] sm:$0xf]
      %v311 = vcombine.high %v307, %v307
      %312 = vrot.lane.b32.xlu0 %v307, 126
      %v313 = vpop.permute.xlu0 %312
      %314 = vrot.lane.b32.xlu0 %v311, 126
      %v315 = vpop.permute.xlu0 %314
      %316 = vrot.lane.b32.xlu0 %v308, 126
      %v317 = vpop.permute.xlu0 %316
      %vm318 = vcmask 1031168
      %v319 = vsel %vm318, %v313, %v315
      %v320 = vsel %vm318, %v315, %v317
      %v323 = vsel %vm232, %v319, 0.0
      %v324 = vsel %vm233, %v320, 0.0
      %325 = vst [vmem:[#allocation3 + $0x10] sm:$0xf] %v323
      %326 = vst [vmem:[#allocation3 + $0x18] sm:$0xf] %v324
      %v327 = vld [vmem:[#allocation2] sm:$0xff]
      %v328 = vld [vmem:[#allocation2 + $0x8] sm:$0xf]
      %v331 = vcombine.high %v327, %v327
      %332 = vrot.lane.b32.xlu0 %v327, 125
      %v333 = vpop.permute.xlu0 %332
      %334 = vrot.lane.b32.xlu0 %v331, 125
      %v335 = vpop.permute.xlu0 %334
      %336 = vrot.lane.b32.xlu0 %v328, 125
      %v337 = vpop.permute.xlu0 %336
      %vm338 = vcmask 1022976
      %v339 = vsel %vm338, %v333, %v335
      %v340 = vsel %vm338, %v335, %v337
      %v343 = vsel %vm244, %v339, 0.0
      %v344 = vsel %vm245, %v340, 0.0
      %v347 = vrot.slane %v343, 4
      %v348 = vrot.slane %v344, 4
      %351 = vst [vmem:[#allocation3 + $0x10] sm:$0xf0] %v347
      %352 = vst [vmem:[#allocation3 + $0x18] sm:$0xf0] %v348
      %v353 = vld [vmem:[#allocation2] sm:$0xff]
      %v354 = vld [vmem:[#allocation2 + $0x8] sm:$0xf]
      %v357 = vcombine.high %v353, %v353
      %358 = vrot.lane.b32.xlu0 %v353, 124
      %v359 = vpop.permute.xlu0 %358
      %360 = vrot.lane.b32.xlu0 %v357, 124
      %v361 = vpop.permute.xlu0 %360
      %362 = vrot.lane.b32.xlu0 %v354, 124
      %v363 = vpop.permute.xlu0 %362
      %vm364 = vcmask 1014784
      %v365 = vsel %vm364, %v359, %v361
      %v366 = vsel %vm364, %v361, %v363
      %v369 = vsel %vm256, %v365, 0.0
      %v370 = vsel %vm257, %v366, 0.0
      %371 = vst [vmem:[#allocation3 + $0x20] sm:$0xf] %v369
      %372 = vst [vmem:[#allocation3 + $0x28] sm:$0xf] %v370
      %v373 = vld [vmem:[#allocation2] sm:$0xff]
      %v374 = vld [vmem:[#allocation2 + $0x8] sm:$0xf]
      %v377 = vcombine.high %v373, %v373
      %378 = vrot.lane.b32.xlu0 %v373, 112
      %v379 = vpop.permute.xlu0 %378
      %380 = vrot.lane.b32.xlu0 %v377, 112
      %v381 = vpop.permute.xlu0 %380
      %382 = vrot.lane.b32.xlu0 %v374, 112
      %v383 = vpop.permute.xlu0 %382
      %vm384 = vcmask 916480
      %v385 = vsel %vm384, %v379, %v381
      %v386 = vsel %vm384, %v381, %v383
      %v389 = vsel %vm210, %v385, 0.0
      %v390 = vsel %vm211, %v386, 0.0
      %v393 = vrot.slane %v389, 4
      %v394 = vrot.slane %v390, 4
      %397 = vst [vmem:[#allocation3 + $0x20] sm:$0xf0] %v393
      %398 = vst [vmem:[#allocation3 + $0x28] sm:$0xf0] %v394
      %v399 = vld [vmem:[#allocation2] sm:$0xff]
      %v400 = vld [vmem:[#allocation2 + $0x8] sm:$0xf]
      %v403 = vcombine.high %v399, %v399
      %404 = vrot.lane.b32.xlu0 %v399, 111
      %v405 = vpop.permute.xlu0 %404
      %406 = vrot.lane.b32.xlu0 %v403, 111
      %v407 = vpop.permute.xlu0 %406
      %408 = vrot.lane.b32.xlu0 %v400, 111
      %v409 = vpop.permute.xlu0 %408
      %vm410 = vcmask 908288
      %v411 = vsel %vm410, %v405, %v407
      %v412 = vsel %vm410, %v407, %v409
      %v415 = vsel %vm222, %v411, 0.0
      %v416 = vsel %vm223, %v412, 0.0
      %417 = vst [vmem:[#allocation3 + $0x30] sm:$0xf] %v415
      %418 = vst [vmem:[#allocation3 + $0x38] sm:$0xf] %v416
      %v419 = vld [vmem:[#allocation2] sm:$0xff]
      %v420 = vld [vmem:[#allocation2 + $0x8] sm:$0xf]
      %v423 = vcombine.high %v419, %v419
      %424 = vrot.lane.b32.xlu0 %v419, 110
      %v425 = vpop.permute.xlu0 %424
      %426 = vrot.lane.b32.xlu0 %v423, 110
      %v427 = vpop.permute.xlu0 %426
      %428 = vrot.lane.b32.xlu0 %v420, 110
      %v429 = vpop.permute.xlu0 %428
      %vm430 = vcmask 900096
      %v431 = vsel %vm430, %v425, %v427
      %v432 = vsel %vm430, %v427, %v429
      %v435 = vsel %vm232, %v431, 0.0
      %v436 = vsel %vm233, %v432, 0.0
      %v439 = vrot.slane %v435, 4
      %v440 = vrot.slane %v436, 4
      %443 = vst [vmem:[#allocation3 + $0x30] sm:$0xf0] %v439
      %444 = vst [vmem:[#allocation3 + $0x38] sm:$0xf0] %v440
      %v445 = vld [vmem:[#allocation2] sm:$0xff]
      %v446 = vld [vmem:[#allocation2 + $0x8] sm:$0xf]
      %v449 = vcombine.high %v445, %v445
      %450 = vrot.lane.b32.xlu0 %v445, 109
      %v451 = vpop.permute.xlu0 %450
      %452 = vrot.lane.b32.xlu0 %v449, 109
      %v453 = vpop.permute.xlu0 %452
      %454 = vrot.lane.b32.xlu0 %v446, 109
      %v455 = vpop.permute.xlu0 %454
      %vm456 = vcmask 891904
      %v457 = vsel %vm456, %v451, %v453
      %v458 = vsel %vm456, %v453, %v455
      %v461 = vsel %vm244, %v457, 0.0
      %v462 = vsel %vm245, %v458, 0.0
      %463 = vst [vmem:[#allocation3 + $0x40] sm:$0xf] %v461
      %464 = vst [vmem:[#allocation3 + $0x48] sm:$0xf] %v462
      %v465 = vld [vmem:[#allocation2] sm:$0xff]
      %v466 = vld [vmem:[#allocation2 + $0x8] sm:$0xf]
      %v469 = vcombine.high %v465, %v465
      %470 = vrot.lane.b32.xlu0 %v465, 108
      %v471 = vpop.permute.xlu0 %470
      %472 = vrot.lane.b32.xlu0 %v469, 108
      %v473 = vpop.permute.xlu0 %472
      %474 = vrot.lane.b32.xlu0 %v466, 108
      %v475 = vpop.permute.xlu0 %474
      %vm476 = vcmask 883712
      %v477 = vsel %vm476, %v471, %v473
      %v478 = vsel %vm476, %v473, %v475
      %v481 = vsel %vm256, %v477, 0.0
      %v482 = vsel %vm257, %v478, 0.0
      %v485 = vrot.slane %v481, 4
      %v486 = vrot.slane %v482, 4
      %489 = vst [vmem:[#allocation3 + $0x40] sm:$0xf0] %v485
      %490 = vst [vmem:[#allocation3 + $0x48] sm:$0xf0] %v486
      %v491 = vld [vmem:[#allocation2] sm:$0xff]
      %v492 = vld [vmem:[#allocation2 + $0x8] sm:$0xf]
      %v495 = vcombine.high %v491, %v491
      %496 = vrot.lane.b32.xlu0 %v491, 96
      %v497 = vpop.permute.xlu0 %496
      %498 = vrot.lane.b32.xlu0 %v495, 96
      %v499 = vpop.permute.xlu0 %498
      %500 = vrot.lane.b32.xlu0 %v492, 96
      %v501 = vpop.permute.xlu0 %500
      %vm502 = vcmask 785408
      %v503 = vsel %vm502, %v497, %v499
      %v504 = vsel %vm502, %v499, %v501
      %v507 = vsel %vm210, %v503, 0.0
      %v508 = vsel %vm211, %v504, 0.0
      %509 = vst [vmem:[#allocation3 + $0x50] sm:$0xf] %v507
      %510 = vst [vmem:[#allocation3 + $0x58] sm:$0xf] %v508
      %v511 = vld [vmem:[#allocation2] sm:$0xff]
      %v512 = vld [vmem:[#allocation2 + $0x8] sm:$0xf]
      %v515 = vcombine.high %v511, %v511
      %516 = vrot.lane.b32.xlu0 %v511, 95
      %v517 = vpop.permute.xlu0 %516
      %518 = vrot.lane.b32.xlu0 %v515, 95
      %v519 = vpop.permute.xlu0 %518
      %520 = vrot.lane.b32.xlu0 %v512, 95
      %v521 = vpop.permute.xlu0 %520
      %vm522 = vcmask 777216
      %v523 = vsel %vm522, %v517, %v519
      %v524 = vsel %vm522, %v519, %v521
      %v527 = vsel %vm222, %v523, 0.0
      %v528 = vsel %vm223, %v524, 0.0
      %v531 = vrot.slane %v527, 4
      %v532 = vrot.slane %v528, 4
      %535 = vst [vmem:[#allocation3 + $0x50] sm:$0xf0] %v531
      %536 = vst [vmem:[#allocation3 + $0x58] sm:$0xf0] %v532
      %v537 = vld [vmem:[#allocation2] sm:$0xff]
      %v538 = vld [vmem:[#allocation2 + $0x8] sm:$0xf]
      %v541 = vcombine.high %v537, %v537
      %542 = vrot.lane.b32.xlu0 %v537, 94
      %v543 = vpop.permute.xlu0 %542
      %544 = vrot.lane.b32.xlu0 %v541, 94
      %v545 = vpop.permute.xlu0 %544
      %546 = vrot.lane.b32.xlu0 %v538, 94
      %v547 = vpop.permute.xlu0 %546
      %vm548 = vcmask 769024
      %v549 = vsel %vm548, %v543, %v545
      %v550 = vsel %vm548, %v545, %v547
      %v553 = vsel %vm232, %v549, 0.0
      %v554 = vsel %vm233, %v550, 0.0
      %555 = vst [vmem:[#allocation3 + $0x60] sm:$0xf] %v553
      %556 = vst [vmem:[#allocation3 + $0x68] sm:$0xf] %v554
      %v557 = vld [vmem:[#allocation2] sm:$0xff]
      %v558 = vld [vmem:[#allocation2 + $0x8] sm:$0xf]
      %v561 = vcombine.high %v557, %v557
      %562 = vrot.lane.b32.xlu0 %v557, 93
      %v563 = vpop.permute.xlu0 %562
      %564 = vrot.lane.b32.xlu0 %v561, 93
      %v565 = vpop.permute.xlu0 %564
      %566 = vrot.lane.b32.xlu0 %v558, 93
      %v567 = vpop.permute.xlu0 %566
      %vm568 = vcmask 760832
      %v569 = vsel %vm568, %v563, %v565
      %v570 = vsel %vm568, %v565, %v567
      %v573 = vsel %vm244, %v569, 0.0
      %v574 = vsel %vm245, %v570, 0.0
      %v577 = vrot.slane %v573, 4
      %v578 = vrot.slane %v574, 4
      %581 = vst [vmem:[#allocation3 + $0x60] sm:$0xf0] %v577
      %582 = vst [vmem:[#allocation3 + $0x68] sm:$0xf0] %v578
      %v583 = vld [vmem:[#allocation2] sm:$0xff]
      %v584 = vld [vmem:[#allocation2 + $0x8] sm:$0xf]
      %v587 = vcombine.high %v583, %v583
      %588 = vrot.lane.b32.xlu0 %v583, 92
      %v589 = vpop.permute.xlu0 %588
      %590 = vrot.lane.b32.xlu0 %v587, 92
      %v591 = vpop.permute.xlu0 %590
      %592 = vrot.lane.b32.xlu0 %v584, 92
      %v593 = vpop.permute.xlu0 %592
      %vm594 = vcmask 752640
      %v595 = vsel %vm594, %v589, %v591
      %v596 = vsel %vm594, %v591, %v593
      %v599 = vsel %vm256, %v595, 0.0
      %v600 = vsel %vm257, %v596, 0.0
      %601 = vst [vmem:[#allocation3 + $0x70] sm:$0xf] %v599
      %602 = vst [vmem:[#allocation3 + $0x78] sm:$0xf] %v600
      %v603 = vld [vmem:[#allocation2] sm:$0xff]
      %v604 = vld [vmem:[#allocation2 + $0x8] sm:$0xf]
      %v607 = vcombine.high %v603, %v603
      %608 = vrot.lane.b32.xlu0 %v603, 80
      %v609 = vpop.permute.xlu0 %608
      %610 = vrot.lane.b32.xlu0 %v607, 80
      %v611 = vpop.permute.xlu0 %610
      %612 = vrot.lane.b32.xlu0 %v604, 80
      %v613 = vpop.permute.xlu0 %612
      %vm614 = vcmask 654336
      %v615 = vsel %vm614, %v609, %v611
      %v616 = vsel %vm614, %v611, %v613
      %v619 = vsel %vm210, %v615, 0.0
      %v620 = vsel %vm211, %v616, 0.0
      %v623 = vrot.slane %v619, 4
      %v624 = vrot.slane %v620, 4
      %627 = vst [vmem:[#allocation3 + $0x70] sm:$0xf0] %v623
      %628 = vst [vmem:[#allocation3 + $0x78] sm:$0xf0] %v624
      %v629 = vld [vmem:[#allocation2] sm:$0xff]
      %v630 = vld [vmem:[#allocation2 + $0x8] sm:$0xf]
      %v633 = vcombine.high %v629, %v629
      %634 = vrot.lane.b32.xlu0 %v629, 79
      %v635 = vpop.permute.xlu0 %634
      %636 = vrot.lane.b32.xlu0 %v633, 79
      %v637 = vpop.permute.xlu0 %636
      %638 = vrot.lane.b32.xlu0 %v630, 79
      %v639 = vpop.permute.xlu0 %638
      %vm640 = vcmask 646144
      %v641 = vsel %vm640, %v635, %v637
      %v642 = vsel %vm640, %v637, %v639
      %v645 = vsel %vm222, %v641, 0.0
      %v646 = vsel %vm223, %v642, 0.0
      %647 = vst [vmem:[#allocation3 + $0x80] sm:$0xf] %v645
      %648 = vst [vmem:[#allocation3 + $0x88] sm:$0xf] %v646
      %v649 = vld [vmem:[#allocation2] sm:$0xff]
      %v650 = vld [vmem:[#allocation2 + $0x8] sm:$0xf]
      %v653 = vcombine.high %v649, %v649
      %654 = vrot.lane.b32.xlu0 %v649, 78
      %v655 = vpop.permute.xlu0 %654
      %656 = vrot.lane.b32.xlu0 %v653, 78
      %v657 = vpop.permute.xlu0 %656
      %658 = vrot.lane.b32.xlu0 %v650, 78
      %v659 = vpop.permute.xlu0 %658
      %vm660 = vcmask 637952
      %v661 = vsel %vm660, %v655, %v657
      %v662 = vsel %vm660, %v657, %v659
      %v665 = vsel %vm232, %v661, 0.0
      %v666 = vsel %vm233, %v662, 0.0
      %v669 = vrot.slane %v665, 4
      %v670 = vrot.slane %v666, 4
      %673 = vst [vmem:[#allocation3 + $0x80] sm:$0xf0] %v669
      %674 = vst [vmem:[#allocation3 + $0x88] sm:$0xf0] %v670
      %v675 = vld [vmem:[#allocation2] sm:$0xff]
      %v676 = vld [vmem:[#allocation2 + $0x8] sm:$0xf]
      %v679 = vcombine.high %v675, %v675
      %680 = vrot.lane.b32.xlu0 %v675, 77
      %v681 = vpop.permute.xlu0 %680
      %682 = vrot.lane.b32.xlu0 %v679, 77
      %v683 = vpop.permute.xlu0 %682
      %684 = vrot.lane.b32.xlu0 %v676, 77
      %v685 = vpop.permute.xlu0 %684
      %vm686 = vcmask 629760
      %v687 = vsel %vm686, %v681, %v683
      %v688 = vsel %vm686, %v683, %v685
      %v691 = vsel %vm244, %v687, 0.0
      %v692 = vsel %vm245, %v688, 0.0
      %693 = vst [vmem:[#allocation3 + $0x90] sm:$0xf] %v691
      %694 = vst [vmem:[#allocation3 + $0x98] sm:$0xf] %v692
      %v695 = vld [vmem:[#allocation2] sm:$0xff]
      %v696 = vld [vmem:[#allocation2 + $0x8] sm:$0xf]
      %v699 = vcombine.high %v695, %v695
      %700 = vrot.lane.b32.xlu0 %v695, 76
      %v701 = vpop.permute.xlu0 %700
      %702 = vrot.lane.b32.xlu0 %v699, 76
      %v703 = vpop.permute.xlu0 %702
      %704 = vrot.lane.b32.xlu0 %v696, 76
      %v705 = vpop.permute.xlu0 %704
      %vm706 = vcmask 621568
      %v707 = vsel %vm706, %v701, %v703
      %v708 = vsel %vm706, %v703, %v705
      %v711 = vsel %vm256, %v707, 0.0
      %v712 = vsel %vm257, %v708, 0.0
      %v715 = vrot.slane %v711, 4
      %v716 = vrot.slane %v712, 4
      %719 = vst [vmem:[#allocation3 + $0x90] sm:$0xf0] %v715
      %720 = vst [vmem:[#allocation3 + $0x98] sm:$0xf0] %v716
      %v721 = vld [vmem:[#allocation2] sm:$0xff]
      %v722 = vld [vmem:[#allocation2 + $0x8] sm:$0xf]
      %v725 = vcombine.high %v721, %v721
      %726 = vrot.lane.b32.xlu0 %v721, 64
      %v727 = vpop.permute.xlu0 %726
      %728 = vrot.lane.b32.xlu0 %v725, 64
      %v729 = vpop.permute.xlu0 %728
      %730 = vrot.lane.b32.xlu0 %v722, 64
      %v731 = vpop.permute.xlu0 %730
      %vm732 = vcmask 523264
      %v733 = vsel %vm732, %v727, %v729
      %v734 = vsel %vm732, %v729, %v731
      %v737 = vsel %vm210, %v733, 0.0
      %v738 = vsel %vm211, %v734, 0.0
      %739 = vst [vmem:[#allocation3 + $0xa0] sm:$0xf] %v737
      %740 = vst [vmem:[#allocation3 + $0xa8] sm:$0xf] %v738
      %v741 = vld [vmem:[#allocation2] sm:$0xff]
      %v742 = vld [vmem:[#allocation2 + $0x8] sm:$0xf]
      %v745 = vcombine.high %v741, %v741
      %746 = vrot.lane.b32.xlu0 %v741, 63
      %v747 = vpop.permute.xlu0 %746
      %748 = vrot.lane.b32.xlu0 %v745, 63
      %v749 = vpop.permute.xlu0 %748
      %750 = vrot.lane.b32.xlu0 %v742, 63
      %v751 = vpop.permute.xlu0 %750
      %vm752 = vcmask 515072
      %v753 = vsel %vm752, %v747, %v749
      %v754 = vsel %vm752, %v749, %v751
      %v757 = vsel %vm222, %v753, 0.0
      %v758 = vsel %vm223, %v754, 0.0
      %v761 = vrot.slane %v757, 4
      %v762 = vrot.slane %v758, 4
      %765 = vst [vmem:[#allocation3 + $0xa0] sm:$0xf0] %v761
      %766 = vst [vmem:[#allocation3 + $0xa8] sm:$0xf0] %v762
      %v767 = vld [vmem:[#allocation2] sm:$0xff]
      %v768 = vld [vmem:[#allocation2 + $0x8] sm:$0xf]
      %v771 = vcombine.high %v767, %v767
      %772 = vrot.lane.b32.xlu0 %v767, 62
      %v773 = vpop.permute.xlu0 %772
      %774 = vrot.lane.b32.xlu0 %v771, 62
      %v775 = vpop.permute.xlu0 %774
      %776 = vrot.lane.b32.xlu0 %v768, 62
      %v777 = vpop.permute.xlu0 %776
      %vm778 = vcmask 506880
      %v779 = vsel %vm778, %v773, %v775
      %v780 = vsel %vm778, %v775, %v777
      %v783 = vsel %vm232, %v779, 0.0
      %v784 = vsel %vm233, %v780, 0.0
      %785 = vst [vmem:[#allocation3 + $0xb0] sm:$0xf] %v783
      %786 = vst [vmem:[#allocation3 + $0xb8] sm:$0xf] %v784
      %v787 = vld [vmem:[#allocation2] sm:$0xff]
      %v788 = vld [vmem:[#allocation2 + $0x8] sm:$0xf]
      %v791 = vcombine.high %v787, %v787
      %792 = vrot.lane.b32.xlu0 %v787, 61
      %v793 = vpop.permute.xlu0 %792
      %794 = vrot.lane.b32.xlu0 %v791, 61
      %v795 = vpop.permute.xlu0 %794
      %796 = vrot.lane.b32.xlu0 %v788, 61
      %v797 = vpop.permute.xlu0 %796
      %vm798 = vcmask 498688
      %v799 = vsel %vm798, %v793, %v795
      %v800 = vsel %vm798, %v795, %v797
      %v803 = vsel %vm244, %v799, 0.0
      %v804 = vsel %vm245, %v800, 0.0
      %v807 = vrot.slane %v803, 4
      %v808 = vrot.slane %v804, 4
      %811 = vst [vmem:[#allocation3 + $0xb0] sm:$0xf0] %v807
      %812 = vst [vmem:[#allocation3 + $0xb8] sm:$0xf0] %v808
      %v813 = vld [vmem:[#allocation2] sm:$0xff]
      %v814 = vld [vmem:[#allocation2 + $0x8] sm:$0xf]
      %v817 = vcombine.high %v813, %v813
      %818 = vrot.lane.b32.xlu0 %v813, 60
      %v819 = vpop.permute.xlu0 %818
      %820 = vrot.lane.b32.xlu0 %v817, 60
      %v821 = vpop.permute.xlu0 %820
      %822 = vrot.lane.b32.xlu0 %v814, 60
      %v823 = vpop.permute.xlu0 %822
      %vm824 = vcmask 490496
      %v825 = vsel %vm824, %v819, %v821
      %v826 = vsel %vm824, %v821, %v823
      %v829 = vsel %vm256, %v825, 0.0
      %v830 = vsel %vm257, %v826, 0.0
      %831 = vst [vmem:[#allocation3 + $0xc0] sm:$0xf] %v829
      %832 = vst [vmem:[#allocation3 + $0xc8] sm:$0xf] %v830
      %v833 = vld [vmem:[%s1] sm:$0xf]
      %v834 = vld [vmem:[#allocation3] sm:$0xff]
      %v835 = vld [vmem:[#allocation3 + $0x8] sm:$0xff]
      %v836 = vld [vmem:[#allocation3 + $0x10] sm:$0xff]
      %v837 = vld [vmem:[#allocation3 + $0x18] sm:$0xff]
      %v838 = vld [vmem:[#allocation3 + $0x20] sm:$0xff]
      %v839 = vld [vmem:[#allocation3 + $0x28] sm:$0xff]
      %v840 = vld [vmem:[#allocation3 + $0x30] sm:$0xff]
      %v841 = vld [vmem:[#allocation3 + $0x38] sm:$0xff]
      %v842 = vld [vmem:[#allocation3 + $0x40] sm:$0xff]
      %v843 = vld [vmem:[#allocation3 + $0x48] sm:$0xff]
      %v844 = vld [vmem:[#allocation3 + $0x50] sm:$0xff]
      %v845 = vld [vmem:[#allocation3 + $0x58] sm:$0xff]
      %v846 = vld [vmem:[#allocation3 + $0x60] sm:$0xff]
      %v847 = vld [vmem:[#allocation3 + $0x68] sm:$0xff]
      %v848 = vld [vmem:[#allocation3 + $0x70] sm:$0xff]
      %v849 = vld [vmem:[#allocation3 + $0x78] sm:$0xff]
      %v850 = vld [vmem:[#allocation3 + $0x80] sm:$0xff]
      %v851 = vld [vmem:[#allocation3 + $0x88] sm:$0xff]
      %v852 = vld [vmem:[#allocation3 + $0x90] sm:$0xff]
      %v853 = vld [vmem:[#allocation3 + $0x98] sm:$0xff]
      %v854 = vld [vmem:[#allocation3 + $0xa0] sm:$0xff]
      %v855 = vld [vmem:[#allocation3 + $0xa8] sm:$0xff]
      %v856 = vld [vmem:[#allocation3 + $0xb0] sm:$0xff]
      %v857 = vld [vmem:[#allocation3 + $0xb8] sm:$0xff]
      %v858 = vld [vmem:[#allocation3 + $0xc0] sm:$0xf]
      %v859 = vld [vmem:[#allocation3 + $0xc8] sm:$0xf]
      %v860 = vld [vmem:[%s2] sm:$0xf]
      %862 = vset.pattern.permute.xlu0 0
      %863 = vperm.xlu0 %862, %v860
      %v864 = vpop.permute.xlu0 %863
      %vm866 = vcmask 818176
      %v868 = vsel %vm866, %v833, 0
      %vm870 = vcmask 1043456
      %v872 = vsel %vm870, %v858, 0
      %v875 = vsel %vm870, %v859, 0
      %877 = vmatprep.subr.mxu0 %v835
      %878 = vmatpush1.msra.mxu0 %v834
      %879 = vmatprep.subr.mxu0 %v837
      %880 = vmatpush1.msra.mxu0 %v836
      %881 = vmatprep.subr.mxu0 %v839
      %882 = vmatpush1.msra.mxu0 %v838
      %883 = vmatprep.subr.mxu0 %v841
      %884 = vmatpush1.msra.mxu0 %v840
      %885 = vmatprep.subr.mxu0 %v843
      %886 = vmatpush1.msra.mxu0 %v842
      %887 = vmatprep.subr.mxu0 %v845
      %888 = vmatpush1.msra.mxu0 %v844
      %889 = vmatprep.subr.mxu0 %v847
      %890 = vmatpush1.msra.mxu0 %v846
      %891 = vmatprep.subr.mxu0 %v849
      %892 = vmatpush1.msra.mxu0 %v848
      %893 = vmatprep.subr.mxu0 %v851
      %894 = vmatpush1.msra.mxu0 %v850
      %895 = vmatprep.subr.mxu0 %v853
      %896 = vmatpush1.msra.mxu0 %v852
      %897 = vmatprep.subr.mxu0 %v855
      %898 = vmatpush1.msra.mxu0 %v854
      %899 = vmatprep.subr.mxu0 %v857
      %900 = vmatpush1.msra.mxu0 %v856
      %901 = vmatprep.subr.mxu0 %v875
      %902 = vmatpush1.msra.mxu0 %v872
      %903 = vmatprep.subr.mxu0 0.0
      %904 = vmatpush1.msra.mxu0 0.0
      %905 = vmatprep.subr.mxu0 0.0
      %906 = vmatpush1.msra.mxu0 0.0
      %907 = vmatprep.subr.mxu0 0.0
      %908 = vmatpush1.msra.mxu0 0.0
      %909 = vmatprep.subr.mxu0 0.0
      %910 = vmatpush1.msra.mxu0 0.0
      %911 = vmatprep.subr.mxu0 0.0
      %912 = vmatpush1.msra.mxu0 0.0
      %913 = vmatprep.subr.mxu0 0.0
      %914 = vmatpush1.msra.mxu0 0.0
      %915 = vmatprep.subr.mxu0 0.0
      %916 = vmatpush1.msra.mxu0 0.0
      %917 = vmatprep.subr.mxu0 0.0
      %918 = vmatpush1.msra.mxu0 0.0
      %919 = vmatprep.subr.mxu0 0.0
      %920 = vmatpush1.msra.mxu0 0.0
      %921 = vmatprep.subr.mxu0 0.0
      %922 = vmatpush1.msra.mxu0 0.0
      %923 = vmatprep.subr.mxu0 0.0
      %924 = vmatpush1.msra.mxu0 0.0
      %925 = vmatprep.subr.mxu0 0.0
      %926 = vmatpush1.msra.mxu0 0.0
      %927 = vmatprep.subr.mxu0 0.0
      %928 = vmatpush1.msra.mxu0 0.0
      %929 = vmatprep.subr.mxu0 0.0
      %930 = vmatpush1.msra.mxu0 0.0
      %931 = vmatprep.subr.mxu0 0.0
      %932 = vmatpush1.msra.mxu0 0.0
      %933 = vmatprep.subr.mxu0 0.0
      %934 = vmatpush1.msra.mxu0 0.0
      %935 = vmatprep.subr.mxu0 0.0
      %936 = vmatpush1.msra.mxu0 0.0
      %937 = vmatprep.subr.mxu0 0.0
      %938 = vmatpush1.msra.mxu0 0.0
      %939 = vmatprep.subr.mxu0 0.0
      %940 = vmatpush1.msra.mxu0 0.0
      %941 = vmatprep.mubr.f32.mxu0 0.0
      %942 = vmatmul.mubr.f32.gmra.mrb[0].mxu0 %v868
      %v943 = vpop.f32.mrb[0].mxu0
      %v944 = vadd.f32 %v864, %v943
      %v945 = vpop.f32.mrb[0].mxu0
      %v946 = vadd.f32 %v864, %v945
      %947 = vdwg.mxu0
      %v948 = vmax.f32 %v944, 0.0
      %v949 = vmax.f32 %v946, 0.0
      %v952 = vcombine.low %v948, %v949
      %953 = vrot.lane.b32.xlu0 %v952, 34
      %v954 = vpop.permute.xlu0 %953
      %v955 = vrot.slane %v954, 4
      %v956 = vsel %vm263, %v955, %v954
      %959 = vst.msk [vmem:[#allocation2] sm:$0xff] %vm269, %v956
      %960 = vst.msk [vmem:[#allocation2 + $0x8] sm:$0xf] %vm271, %v955
      %v961 = vld [vmem:[#allocation2] sm:$0xff]
      %v963 = vcombine.high %v961, %v961
      %v965 = vsel %vm210, %v961, 0.0
      %v966 = vsel %vm211, %v963, 0.0
      %967 = vst [vmem:[#allocation3] sm:$0xf] %v965
      %968 = vst [vmem:[#allocation3 + $0x8] sm:$0xf] %v966
      %v969 = vld [vmem:[#allocation2] sm:$0xff]
      %v970 = vld [vmem:[#allocation2 + $0x8] sm:$0xf]
      %v973 = vcombine.high %v969, %v969
      %974 = vrot.lane.b32.xlu0 %v969, 127
      %v975 = vpop.permute.xlu0 %974
      %976 = vrot.lane.b32.xlu0 %v973, 127
      %v977 = vpop.permute.xlu0 %976
      %978 = vrot.lane.b32.xlu0 %v970, 127
      %v979 = vpop.permute.xlu0 %978
      %v980 = vsel %vm292, %v975, %v977
      %v981 = vsel %vm292, %v977, %v979
      %v984 = vsel %vm222, %v980, 0.0
      %v985 = vsel %vm223, %v981, 0.0
      %v988 = vrot.slane %v984, 4
      %v989 = vrot.slane %v985, 4
      %992 = vst [vmem:[#allocation3] sm:$0xf0] %v988
      %993 = vst [vmem:[#allocation3 + $0x8] sm:$0xf0] %v989
      %v994 = vld [vmem:[#allocation2] sm:$0xff]
      %v995 = vld [vmem:[#allocation2 + $0x8] sm:$0xf]
      %v998 = vcombine.high %v994, %v994
      %999 = vrot.lane.b32.xlu0 %v994, 126
      %v1000 = vpop.permute.xlu0 %999
      %1001 = vrot.lane.b32.xlu0 %v998, 126
      %v1002 = vpop.permute.xlu0 %1001
      %1003 = vrot.lane.b32.xlu0 %v995, 126
      %v1004 = vpop.permute.xlu0 %1003
      %v1005 = vsel %vm318, %v1000, %v1002
      %v1006 = vsel %vm318, %v1002, %v1004
      %v1009 = vsel %vm232, %v1005, 0.0
      %v1010 = vsel %vm233, %v1006, 0.0
      %1011 = vst [vmem:[#allocation3 + $0x10] sm:$0xf] %v1009
      %1012 = vst [vmem:[#allocation3 + $0x18] sm:$0xf] %v1010
      %v1013 = vld [vmem:[#allocation2] sm:$0xff]
      %v1014 = vld [vmem:[#allocation2 + $0x8] sm:$0xf]
      %v1017 = vcombine.high %v1013, %v1013
      %1018 = vrot.lane.b32.xlu0 %v1013, 125
      %v1019 = vpop.permute.xlu0 %1018
      %1020 = vrot.lane.b32.xlu0 %v1017, 125
      %v1021 = vpop.permute.xlu0 %1020
      %1022 = vrot.lane.b32.xlu0 %v1014, 125
      %v1023 = vpop.permute.xlu0 %1022
      %v1024 = vsel %vm338, %v1019, %v1021
      %v1025 = vsel %vm338, %v1021, %v1023
      %v1028 = vsel %vm244, %v1024, 0.0
      %v1029 = vsel %vm245, %v1025, 0.0
      %v1032 = vrot.slane %v1028, 4
      %v1033 = vrot.slane %v1029, 4
      %1036 = vst [vmem:[#allocation3 + $0x10] sm:$0xf0] %v1032
      %1037 = vst [vmem:[#allocation3 + $0x18] sm:$0xf0] %v1033
      %v1038 = vld [vmem:[#allocation2] sm:$0xff]
      %v1039 = vld [vmem:[#allocation2 + $0x8] sm:$0xf]
      %v1042 = vcombine.high %v1038, %v1038
      %1043 = vrot.lane.b32.xlu0 %v1038, 124
      %v1044 = vpop.permute.xlu0 %1043
      %1045 = vrot.lane.b32.xlu0 %v1042, 124
      %v1046 = vpop.permute.xlu0 %1045
      %1047 = vrot.lane.b32.xlu0 %v1039, 124
      %v1048 = vpop.permute.xlu0 %1047
      %v1049 = vsel %vm364, %v1044, %v1046
      %v1050 = vsel %vm364, %v1046, %v1048
      %v1053 = vsel %vm256, %v1049, 0.0
      %v1054 = vsel %vm257, %v1050, 0.0
      %1055 = vst [vmem:[#allocation3 + $0x20] sm:$0xf] %v1053
      %1056 = vst [vmem:[#allocation3 + $0x28] sm:$0xf] %v1054
      %v1057 = vld [vmem:[#allocation2] sm:$0xff]
      %v1058 = vld [vmem:[#allocation2 + $0x8] sm:$0xf]
      %v1061 = vcombine.high %v1057, %v1057
      %1062 = vrot.lane.b32.xlu0 %v1057, 112
      %v1063 = vpop.permute.xlu0 %1062
      %1064 = vrot.lane.b32.xlu0 %v1061, 112
      %v1065 = vpop.permute.xlu0 %1064
      %1066 = vrot.lane.b32.xlu0 %v1058, 112
      %v1067 = vpop.permute.xlu0 %1066
      %v1068 = vsel %vm384, %v1063, %v1065
      %v1069 = vsel %vm384, %v1065, %v1067
      %v1072 = vsel %vm210, %v1068, 0.0
      %v1073 = vsel %vm211, %v1069, 0.0
      %v1076 = vrot.slane %v1072, 4
      %v1077 = vrot.slane %v1073, 4
      %1080 = vst [vmem:[#allocation3 + $0x20] sm:$0xf0] %v1076
      %1081 = vst [vmem:[#allocation3 + $0x28] sm:$0xf0] %v1077
      %v1082 = vld [vmem:[#allocation2] sm:$0xff]
      %v1083 = vld [vmem:[#allocation2 + $0x8] sm:$0xf]
      %v1086 = vcombine.high %v1082, %v1082
      %1087 = vrot.lane.b32.xlu0 %v1082, 111
      %v1088 = vpop.permute.xlu0 %1087
      %1089 = vrot.lane.b32.xlu0 %v1086, 111
      %v1090 = vpop.permute.xlu0 %1089
      %1091 = vrot.lane.b32.xlu0 %v1083, 111
      %v1092 = vpop.permute.xlu0 %1091
      %v1093 = vsel %vm410, %v1088, %v1090
      %v1094 = vsel %vm410, %v1090, %v1092
      %v1097 = vsel %vm222, %v1093, 0.0
      %v1098 = vsel %vm223, %v1094, 0.0
      %1099 = vst [vmem:[#allocation3 + $0x30] sm:$0xf] %v1097
      %1100 = vst [vmem:[#allocation3 + $0x38] sm:$0xf] %v1098
      %v1101 = vld [vmem:[#allocation2] sm:$0xff]
      %v1102 = vld [vmem:[#allocation2 + $0x8] sm:$0xf]
      %v1105 = vcombine.high %v1101, %v1101
      %1106 = vrot.lane.b32.xlu0 %v1101, 110
      %v1107 = vpop.permute.xlu0 %1106
      %1108 = vrot.lane.b32.xlu0 %v1105, 110
      %v1109 = vpop.permute.xlu0 %1108
      %1110 = vrot.lane.b32.xlu0 %v1102, 110
      %v1111 = vpop.permute.xlu0 %1110
      %v1112 = vsel %vm430, %v1107, %v1109
      %v1113 = vsel %vm430, %v1109, %v1111
      %v1116 = vsel %vm232, %v1112, 0.0
      %v1117 = vsel %vm233, %v1113, 0.0
      %v1120 = vrot.slane %v1116, 4
      %v1121 = vrot.slane %v1117, 4
      %1124 = vst [vmem:[#allocation3 + $0x30] sm:$0xf0] %v1120
      %1125 = vst [vmem:[#allocation3 + $0x38] sm:$0xf0] %v1121
      %v1126 = vld [vmem:[#allocation2] sm:$0xff]
      %v1127 = vld [vmem:[#allocation2 + $0x8] sm:$0xf]
      %v1130 = vcombine.high %v1126, %v1126
      %1131 = vrot.lane.b32.xlu0 %v1126, 109
      %v1132 = vpop.permute.xlu0 %1131
      %1133 = vrot.lane.b32.xlu0 %v1130, 109
      %v1134 = vpop.permute.xlu0 %1133
      %1135 = vrot.lane.b32.xlu0 %v1127, 109
      %v1136 = vpop.permute.xlu0 %1135
      %v1137 = vsel %vm456, %v1132, %v1134
      %v1138 = vsel %vm456, %v1134, %v1136
      %v1141 = vsel %vm244, %v1137, 0.0
      %v1142 = vsel %vm245, %v1138, 0.0
      %1143 = vst [vmem:[#allocation3 + $0x40] sm:$0xf] %v1141
      %1144 = vst [vmem:[#allocation3 + $0x48] sm:$0xf] %v1142
      %v1145 = vld [vmem:[#allocation2] sm:$0xff]
      %v1146 = vld [vmem:[#allocation2 + $0x8] sm:$0xf]
      %v1149 = vcombine.high %v1145, %v1145
      %1150 = vrot.lane.b32.xlu0 %v1145, 108
      %v1151 = vpop.permute.xlu0 %1150
      %1152 = vrot.lane.b32.xlu0 %v1149, 108
      %v1153 = vpop.permute.xlu0 %1152
      %1154 = vrot.lane.b32.xlu0 %v1146, 108
      %v1155 = vpop.permute.xlu0 %1154
      %v1156 = vsel %vm476, %v1151, %v1153
      %v1157 = vsel %vm476, %v1153, %v1155
      %v1160 = vsel %vm256, %v1156, 0.0
      %v1161 = vsel %vm257, %v1157, 0.0
      %v1164 = vrot.slane %v1160, 4
      %v1165 = vrot.slane %v1161, 4
      %1168 = vst [vmem:[#allocation3 + $0x40] sm:$0xf0] %v1164
      %1169 = vst [vmem:[#allocation3 + $0x48] sm:$0xf0] %v1165
      %v1170 = vld [vmem:[#allocation2] sm:$0xff]
      %v1171 = vld [vmem:[#allocation2 + $0x8] sm:$0xf]
      %v1174 = vcombine.high %v1170, %v1170
      %1175 = vrot.lane.b32.xlu0 %v1170, 96
      %v1176 = vpop.permute.xlu0 %1175
      %1177 = vrot.lane.b32.xlu0 %v1174, 96
      %v1178 = vpop.permute.xlu0 %1177
      %1179 = vrot.lane.b32.xlu0 %v1171, 96
      %v1180 = vpop.permute.xlu0 %1179
      %v1181 = vsel %vm502, %v1176, %v1178
      %v1182 = vsel %vm502, %v1178, %v1180
      %v1185 = vsel %vm210, %v1181, 0.0
      %v1186 = vsel %vm211, %v1182, 0.0
      %1187 = vst [vmem:[#allocation3 + $0x50] sm:$0xf] %v1185
      %1188 = vst [vmem:[#allocation3 + $0x58] sm:$0xf] %v1186
      %v1189 = vld [vmem:[#allocation2] sm:$0xff]
      %v1190 = vld [vmem:[#allocation2 + $0x8] sm:$0xf]
      %v1193 = vcombine.high %v1189, %v1189
      %1194 = vrot.lane.b32.xlu0 %v1189, 95
      %v1195 = vpop.permute.xlu0 %1194
      %1196 = vrot.lane.b32.xlu0 %v1193, 95
      %v1197 = vpop.permute.xlu0 %1196
      %1198 = vrot.lane.b32.xlu0 %v1190, 95
      %v1199 = vpop.permute.xlu0 %1198
      %v1200 = vsel %vm522, %v1195, %v1197
      %v1201 = vsel %vm522, %v1197, %v1199
      %v1204 = vsel %vm222, %v1200, 0.0
      %v1205 = vsel %vm223, %v1201, 0.0
      %v1208 = vrot.slane %v1204, 4
      %v1209 = vrot.slane %v1205, 4
      %1212 = vst [vmem:[#allocation3 + $0x50] sm:$0xf0] %v1208
      %1213 = vst [vmem:[#allocation3 + $0x58] sm:$0xf0] %v1209
      %v1214 = vld [vmem:[#allocation2] sm:$0xff]
      %v1215 = vld [vmem:[#allocation2 + $0x8] sm:$0xf]
      %v1218 = vcombine.high %v1214, %v1214
      %1219 = vrot.lane.b32.xlu0 %v1214, 94
      %v1220 = vpop.permute.xlu0 %1219
      %1221 = vrot.lane.b32.xlu0 %v1218, 94
      %v1222 = vpop.permute.xlu0 %1221
      %1223 = vrot.lane.b32.xlu0 %v1215, 94
      %v1224 = vpop.permute.xlu0 %1223
      %v1225 = vsel %vm548, %v1220, %v1222
      %v1226 = vsel %vm548, %v1222, %v1224
      %v1229 = vsel %vm232, %v1225, 0.0
      %v1230 = vsel %vm233, %v1226, 0.0
      %1231 = vst [vmem:[#allocation3 + $0x60] sm:$0xf] %v1229
      %1232 = vst [vmem:[#allocation3 + $0x68] sm:$0xf] %v1230
      %v1233 = vld [vmem:[#allocation2] sm:$0xff]
      %v1234 = vld [vmem:[#allocation2 + $0x8] sm:$0xf]
      %v1237 = vcombine.high %v1233, %v1233
      %1238 = vrot.lane.b32.xlu0 %v1233, 93
      %v1239 = vpop.permute.xlu0 %1238
      %1240 = vrot.lane.b32.xlu0 %v1237, 93
      %v1241 = vpop.permute.xlu0 %1240
      %1242 = vrot.lane.b32.xlu0 %v1234, 93
      %v1243 = vpop.permute.xlu0 %1242
      %v1244 = vsel %vm568, %v1239, %v1241
      %v1245 = vsel %vm568, %v1241, %v1243
      %v1248 = vsel %vm244, %v1244, 0.0
      %v1249 = vsel %vm245, %v1245, 0.0
      %v1252 = vrot.slane %v1248, 4
      %v1253 = vrot.slane %v1249, 4
      %1256 = vst [vmem:[#allocation3 + $0x60] sm:$0xf0] %v1252
      %1257 = vst [vmem:[#allocation3 + $0x68] sm:$0xf0] %v1253
      %v1258 = vld [vmem:[#allocation2] sm:$0xff]
      %v1259 = vld [vmem:[#allocation2 + $0x8] sm:$0xf]
      %v1262 = vcombine.high %v1258, %v1258
      %1263 = vrot.lane.b32.xlu0 %v1258, 92
      %v1264 = vpop.permute.xlu0 %1263
      %1265 = vrot.lane.b32.xlu0 %v1262, 92
      %v1266 = vpop.permute.xlu0 %1265
      %1267 = vrot.lane.b32.xlu0 %v1259, 92
      %v1268 = vpop.permute.xlu0 %1267
      %v1269 = vsel %vm594, %v1264, %v1266
      %v1270 = vsel %vm594, %v1266, %v1268
      %v1273 = vsel %vm256, %v1269, 0.0
      %v1274 = vsel %vm257, %v1270, 0.0
      %1275 = vst [vmem:[#allocation3 + $0x70] sm:$0xf] %v1273
      %1276 = vst [vmem:[#allocation3 + $0x78] sm:$0xf] %v1274
      %v1277 = vld [vmem:[#allocation2] sm:$0xff]
      %v1278 = vld [vmem:[#allocation2 + $0x8] sm:$0xf]
      %v1281 = vcombine.high %v1277, %v1277
      %1282 = vrot.lane.b32.xlu0 %v1277, 80
      %v1283 = vpop.permute.xlu0 %1282
      %1284 = vrot.lane.b32.xlu0 %v1281, 80
      %v1285 = vpop.permute.xlu0 %1284
      %1286 = vrot.lane.b32.xlu0 %v1278, 80
      %v1287 = vpop.permute.xlu0 %1286
      %v1288 = vsel %vm614, %v1283, %v1285
      %v1289 = vsel %vm614, %v1285, %v1287
      %v1292 = vsel %vm210, %v1288, 0.0
      %v1293 = vsel %vm211, %v1289, 0.0
      %v1296 = vrot.slane %v1292, 4
      %v1297 = vrot.slane %v1293, 4
      %1300 = vst [vmem:[#allocation3 + $0x70] sm:$0xf0] %v1296
      %1301 = vst [vmem:[#allocation3 + $0x78] sm:$0xf0] %v1297
      %v1302 = vld [vmem:[#allocation2] sm:$0xff]
      %v1303 = vld [vmem:[#allocation2 + $0x8] sm:$0xf]
      %v1306 = vcombine.high %v1302, %v1302
      %1307 = vrot.lane.b32.xlu0 %v1302, 79
      %v1308 = vpop.permute.xlu0 %1307
      %1309 = vrot.lane.b32.xlu0 %v1306, 79
      %v1310 = vpop.permute.xlu0 %1309
      %1311 = vrot.lane.b32.xlu0 %v1303, 79
      %v1312 = vpop.permute.xlu0 %1311
      %v1313 = vsel %vm640, %v1308, %v1310
      %v1314 = vsel %vm640, %v1310, %v1312
      %v1317 = vsel %vm222, %v1313, 0.0
      %v1318 = vsel %vm223, %v1314, 0.0
      %1319 = vst [vmem:[#allocation3 + $0x80] sm:$0xf] %v1317
      %1320 = vst [vmem:[#allocation3 + $0x88] sm:$0xf] %v1318
      %v1321 = vld [vmem:[#allocation2] sm:$0xff]
      %v1322 = vld [vmem:[#allocation2 + $0x8] sm:$0xf]
      %v1325 = vcombine.high %v1321, %v1321
      %1326 = vrot.lane.b32.xlu0 %v1321, 78
      %v1327 = vpop.permute.xlu0 %1326
      %1328 = vrot.lane.b32.xlu0 %v1325, 78
      %v1329 = vpop.permute.xlu0 %1328
      %1330 = vrot.lane.b32.xlu0 %v1322, 78
      %v1331 = vpop.permute.xlu0 %1330
      %v1332 = vsel %vm660, %v1327, %v1329
      %v1333 = vsel %vm660, %v1329, %v1331
      %v1336 = vsel %vm232, %v1332, 0.0
      %v1337 = vsel %vm233, %v1333, 0.0
      %v1340 = vrot.slane %v1336, 4
      %v1341 = vrot.slane %v1337, 4
      %1344 = vst [vmem:[#allocation3 + $0x80] sm:$0xf0] %v1340
      %1345 = vst [vmem:[#allocation3 + $0x88] sm:$0xf0] %v1341
      %v1346 = vld [vmem:[#allocation2] sm:$0xff]
      %v1347 = vld [vmem:[#allocation2 + $0x8] sm:$0xf]
      %v1350 = vcombine.high %v1346, %v1346
      %1351 = vrot.lane.b32.xlu0 %v1346, 77
      %v1352 = vpop.permute.xlu0 %1351
      %1353 = vrot.lane.b32.xlu0 %v1350, 77
      %v1354 = vpop.permute.xlu0 %1353
      %1355 = vrot.lane.b32.xlu0 %v1347, 77
      %v1356 = vpop.permute.xlu0 %1355
      %v1357 = vsel %vm686, %v1352, %v1354
      %v1358 = vsel %vm686, %v1354, %v1356
      %v1361 = vsel %vm244, %v1357, 0.0
      %v1362 = vsel %vm245, %v1358, 0.0
      %1363 = vst [vmem:[#allocation3 + $0x90] sm:$0xf] %v1361
      %1364 = vst [vmem:[#allocation3 + $0x98] sm:$0xf] %v1362
      %v1365 = vld [vmem:[#allocation2] sm:$0xff]
      %v1366 = vld [vmem:[#allocation2 + $0x8] sm:$0xf]
      %v1369 = vcombine.high %v1365, %v1365
      %1370 = vrot.lane.b32.xlu0 %v1365, 76
      %v1371 = vpop.permute.xlu0 %1370
      %1372 = vrot.lane.b32.xlu0 %v1369, 76
      %v1373 = vpop.permute.xlu0 %1372
      %1374 = vrot.lane.b32.xlu0 %v1366, 76
      %v1375 = vpop.permute.xlu0 %1374
      %v1376 = vsel %vm706, %v1371, %v1373
      %v1377 = vsel %vm706, %v1373, %v1375
      %v1380 = vsel %vm256, %v1376, 0.0
      %v1381 = vsel %vm257, %v1377, 0.0
      %v1384 = vrot.slane %v1380, 4
      %v1385 = vrot.slane %v1381, 4
      %1388 = vst [vmem:[#allocation3 + $0x90] sm:$0xf0] %v1384
      %1389 = vst [vmem:[#allocation3 + $0x98] sm:$0xf0] %v1385
      %v1390 = vld [vmem:[#allocation2] sm:$0xff]
      %v1391 = vld [vmem:[#allocation2 + $0x8] sm:$0xf]
      %v1394 = vcombine.high %v1390, %v1390
      %1395 = vrot.lane.b32.xlu0 %v1390, 64
      %v1396 = vpop.permute.xlu0 %1395
      %1397 = vrot.lane.b32.xlu0 %v1394, 64
      %v1398 = vpop.permute.xlu0 %1397
      %1399 = vrot.lane.b32.xlu0 %v1391, 64
      %v1400 = vpop.permute.xlu0 %1399
      %v1401 = vsel %vm732, %v1396, %v1398
      %v1402 = vsel %vm732, %v1398, %v1400
      %v1405 = vsel %vm210, %v1401, 0.0
      %v1406 = vsel %vm211, %v1402, 0.0
      %1407 = vst [vmem:[#allocation3 + $0xa0] sm:$0xf] %v1405
      %1408 = vst [vmem:[#allocation3 + $0xa8] sm:$0xf] %v1406
      %v1409 = vld [vmem:[#allocation2] sm:$0xff]
      %v1410 = vld [vmem:[#allocation2 + $0x8] sm:$0xf]
      %v1413 = vcombine.high %v1409, %v1409
      %1414 = vrot.lane.b32.xlu0 %v1409, 63
      %v1415 = vpop.permute.xlu0 %1414
      %1416 = vrot.lane.b32.xlu0 %v1413, 63
      %v1417 = vpop.permute.xlu0 %1416
      %1418 = vrot.lane.b32.xlu0 %v1410, 63
      %v1419 = vpop.permute.xlu0 %1418
      %v1420 = vsel %vm752, %v1415, %v1417
      %v1421 = vsel %vm752, %v1417, %v1419
      %v1424 = vsel %vm222, %v1420, 0.0
      %v1425 = vsel %vm223, %v1421, 0.0
      %v1428 = vrot.slane %v1424, 4
      %v1429 = vrot.slane %v1425, 4
      %1432 = vst [vmem:[#allocation3 + $0xa0] sm:$0xf0] %v1428
      %1433 = vst [vmem:[#allocation3 + $0xa8] sm:$0xf0] %v1429
      %v1434 = vld [vmem:[#allocation2] sm:$0xff]
      %v1435 = vld [vmem:[#allocation2 + $0x8] sm:$0xf]
      %v1438 = vcombine.high %v1434, %v1434
      %1439 = vrot.lane.b32.xlu0 %v1434, 62
      %v1440 = vpop.permute.xlu0 %1439
      %1441 = vrot.lane.b32.xlu0 %v1438, 62
      %v1442 = vpop.permute.xlu0 %1441
      %1443 = vrot.lane.b32.xlu0 %v1435, 62
      %v1444 = vpop.permute.xlu0 %1443
      %v1445 = vsel %vm778, %v1440, %v1442
      %v1446 = vsel %vm778, %v1442, %v1444
      %v1449 = vsel %vm232, %v1445, 0.0
      %v1450 = vsel %vm233, %v1446, 0.0
      %1451 = vst [vmem:[#allocation3 + $0xb0] sm:$0xf] %v1449
      %1452 = vst [vmem:[#allocation3 + $0xb8] sm:$0xf] %v1450
      %v1453 = vld [vmem:[#allocation2] sm:$0xff]
      %v1454 = vld [vmem:[#allocation2 + $0x8] sm:$0xf]
      %v1457 = vcombine.high %v1453, %v1453
      %1458 = vrot.lane.b32.xlu0 %v1453, 61
      %v1459 = vpop.permute.xlu0 %1458
      %1460 = vrot.lane.b32.xlu0 %v1457, 61
      %v1461 = vpop.permute.xlu0 %1460
      %1462 = vrot.lane.b32.xlu0 %v1454, 61
      %v1463 = vpop.permute.xlu0 %1462
      %v1464 = vsel %vm798, %v1459, %v1461
      %v1465 = vsel %vm798, %v1461, %v1463
      %v1468 = vsel %vm244, %v1464, 0.0
      %v1469 = vsel %vm245, %v1465, 0.0
      %v1472 = vrot.slane %v1468, 4
      %v1473 = vrot.slane %v1469, 4
      %1476 = vst [vmem:[#allocation3 + $0xb0] sm:$0xf0] %v1472
      %1477 = vst [vmem:[#allocation3 + $0xb8] sm:$0xf0] %v1473
      %v1478 = vld [vmem:[#allocation2] sm:$0xff]
      %v1479 = vld [vmem:[#allocation2 + $0x8] sm:$0xf]
      %v1482 = vcombine.high %v1478, %v1478
      %1483 = vrot.lane.b32.xlu0 %v1478, 60
      %v1484 = vpop.permute.xlu0 %1483
      %1485 = vrot.lane.b32.xlu0 %v1482, 60
      %v1486 = vpop.permute.xlu0 %1485
      %1487 = vrot.lane.b32.xlu0 %v1479, 60
      %v1488 = vpop.permute.xlu0 %1487
      %v1489 = vsel %vm824, %v1484, %v1486
      %v1490 = vsel %vm824, %v1486, %v1488
      %v1493 = vsel %vm256, %v1489, 0.0
      %v1494 = vsel %vm257, %v1490, 0.0
      %1495 = vst [vmem:[#allocation3 + $0xc0] sm:$0xf] %v1493
      %1496 = vst [vmem:[#allocation3 + $0xc8] sm:$0xf] %v1494
      %s1497 = scalar_lea.vmem %s1, 4
      %v1498 = vld [vmem:[%s1497] sm:$0xf]
      %v1499 = vld [vmem:[#allocation3] sm:$0xff]
      %v1500 = vld [vmem:[#allocation3 + $0x8] sm:$0xff]
      %v1501 = vld [vmem:[#allocation3 + $0x10] sm:$0xff]
      %v1502 = vld [vmem:[#allocation3 + $0x18] sm:$0xff]
      %v1503 = vld [vmem:[#allocation3 + $0x20] sm:$0xff]
      %v1504 = vld [vmem:[#allocation3 + $0x28] sm:$0xff]
      %v1505 = vld [vmem:[#allocation3 + $0x30] sm:$0xff]
      %v1506 = vld [vmem:[#allocation3 + $0x38] sm:$0xff]
      %v1507 = vld [vmem:[#allocation3 + $0x40] sm:$0xff]
      %v1508 = vld [vmem:[#allocation3 + $0x48] sm:$0xff]
      %v1509 = vld [vmem:[#allocation3 + $0x50] sm:$0xff]
      %v1510 = vld [vmem:[#allocation3 + $0x58] sm:$0xff]
      %v1511 = vld [vmem:[#allocation3 + $0x60] sm:$0xff]
      %v1512 = vld [vmem:[#allocation3 + $0x68] sm:$0xff]
      %v1513 = vld [vmem:[#allocation3 + $0x70] sm:$0xff]
      %v1514 = vld [vmem:[#allocation3 + $0x78] sm:$0xff]
      %v1515 = vld [vmem:[#allocation3 + $0x80] sm:$0xff]
      %v1516 = vld [vmem:[#allocation3 + $0x88] sm:$0xff]
      %v1517 = vld [vmem:[#allocation3 + $0x90] sm:$0xff]
      %v1518 = vld [vmem:[#allocation3 + $0x98] sm:$0xff]
      %v1519 = vld [vmem:[#allocation3 + $0xa0] sm:$0xff]
      %v1520 = vld [vmem:[#allocation3 + $0xa8] sm:$0xff]
      %v1521 = vld [vmem:[#allocation3 + $0xb0] sm:$0xff]
      %v1522 = vld [vmem:[#allocation3 + $0xb8] sm:$0xff]
      %v1523 = vld [vmem:[#allocation3 + $0xc0] sm:$0xf]
      %v1524 = vld [vmem:[#allocation3 + $0xc8] sm:$0xf]
      %s1525 = scalar_lea.vmem %s2, 4
      %v1526 = vld [vmem:[%s1525] sm:$0xf]
      %1528 = vset.pattern.permute.xlu0 0
      %1529 = vperm.xlu0 %1528, %v1526
      %v1530 = vpop.permute.xlu0 %1529
      %v1533 = vsel %vm866, %v1498, 0
      %v1536 = vsel %vm870, %v1523, 0
      %v1539 = vsel %vm870, %v1524, 0
      %1541 = vmatprep.subr.mxu0 %v1500
      %1542 = vmatpush1.msra.mxu0 %v1499
      %1543 = vmatprep.subr.mxu0 %v1502
      %1544 = vmatpush1.msra.mxu0 %v1501
      %1545 = vmatprep.subr.mxu0 %v1504
      %1546 = vmatpush1.msra.mxu0 %v1503
      %1547 = vmatprep.subr.mxu0 %v1506
      %1548 = vmatpush1.msra.mxu0 %v1505
      %1549 = vmatprep.subr.mxu0 %v1508
      %1550 = vmatpush1.msra.mxu0 %v1507
      %1551 = vmatprep.subr.mxu0 %v1510
      %1552 = vmatpush1.msra.mxu0 %v1509
      %1553 = vmatprep.subr.mxu0 %v1512
      %1554 = vmatpush1.msra.mxu0 %v1511
      %1555 = vmatprep.subr.mxu0 %v1514
      %1556 = vmatpush1.msra.mxu0 %v1513
      %1557 = vmatprep.subr.mxu0 %v1516
      %1558 = vmatpush1.msra.mxu0 %v1515
      %1559 = vmatprep.subr.mxu0 %v1518
      %1560 = vmatpush1.msra.mxu0 %v1517
      %1561 = vmatprep.subr.mxu0 %v1520
      %1562 = vmatpush1.msra.mxu0 %v1519
      %1563 = vmatprep.subr.mxu0 %v1522
      %1564 = vmatpush1.msra.mxu0 %v1521
      %1565 = vmatprep.subr.mxu0 %v1539
      %1566 = vmatpush1.msra.mxu0 %v1536
      %1567 = vmatprep.subr.mxu0 0.0
      %1568 = vmatpush1.msra.mxu0 0.0
      %1569 = vmatprep.subr.mxu0 0.0
      %1570 = vmatpush1.msra.mxu0 0.0
      %1571 = vmatprep.subr.mxu0 0.0
      %1572 = vmatpush1.msra.mxu0 0.0
      %1573 = vmatprep.subr.mxu0 0.0
      %1574 = vmatpush1.msra.mxu0 0.0
      %1575 = vmatprep.subr.mxu0 0.0
      %1576 = vmatpush1.msra.mxu0 0.0
      %1577 = vmatprep.subr.mxu0 0.0
      %1578 = vmatpush1.msra.mxu0 0.0
      %1579 = vmatprep.subr.mxu0 0.0
      %1580 = vmatpush1.msra.mxu0 0.0
      %1581 = vmatprep.subr.mxu0 0.0
      %1582 = vmatpush1.msra.mxu0 0.0
      %1583 = vmatprep.subr.mxu0 0.0
      %1584 = vmatpush1.msra.mxu0 0.0
      %1585 = vmatprep.subr.mxu0 0.0
      %1586 = vmatpush1.msra.mxu0 0.0
      %1587 = vmatprep.subr.mxu0 0.0
      %1588 = vmatpush1.msra.mxu0 0.0
      %1589 = vmatprep.subr.mxu0 0.0
      %1590 = vmatpush1.msra.mxu0 0.0
      %1591 = vmatprep.subr.mxu0 0.0
      %1592 = vmatpush1.msra.mxu0 0.0
      %1593 = vmatprep.subr.mxu0 0.0
      %1594 = vmatpush1.msra.mxu0 0.0
      %1595 = vmatprep.subr.mxu0 0.0
      %1596 = vmatpush1.msra.mxu0 0.0
      %1597 = vmatprep.subr.mxu0 0.0
      %1598 = vmatpush1.msra.mxu0 0.0
      %1599 = vmatprep.subr.mxu0 0.0
      %1600 = vmatpush1.msra.mxu0 0.0
      %1601 = vmatprep.subr.mxu0 0.0
      %1602 = vmatpush1.msra.mxu0 0.0
      %1603 = vmatprep.subr.mxu0 0.0
      %1604 = vmatpush1.msra.mxu0 0.0
      %1605 = vmatprep.mubr.f32.mxu0 0.0
      %1606 = vmatmul.mubr.f32.gmra.mrb[0].mxu0 %v1533
      %v1607 = vpop.f32.mrb[0].mxu0
      %v1608 = vadd.f32 %v1530, %v1607
      %v1609 = vpop.f32.mrb[0].mxu0
      %v1610 = vadd.f32 %v1530, %v1609
      %1611 = vdwg.mxu0
      %v1612 = vmax.f32 %v1608, 0.0
      %v1613 = vmax.f32 %v1610, 0.0
      %v1616 = vcombine.low %v1612, %v1613
      %1618 = vst [vmem:[%s170] sm:$0xff] %v1616
      %p1619 = scmp.lt.s32.totalorder %s14, 1
      %s1620 = scalar_select %p1619, %s14, 1
      %s1621 = smul.addr %s1620, 2
      %s1622 = smul.addr %s1621, 4
      %s1623 = scalar_lea.vmem %s3, %s1622
      // Predicated region
      $region33: #{attention_model_forward.1} parent=31 // pred_check
        %p1624 = pneg %p100
      $region34: #{attention_model_forward.1} parent=31 // pred_check_branch
        %1626 = sbr.rel (%p1624) target = $region36
      $region35: #{attention_model_forward.1} parent=31 // pred_region
        _
      $region36: #{attention_model_forward.1} parent=31 // pred_fallthru
        _
    $region32: #{attention_model_forward.1} parent=5 // pred_fallthru
      _
    %p1627 = scmp.le.s32.totalorder 2, %s9
    // Predicated region
    $region37: #{attention_model_forward.1} parent=5 // pred_check
      %p1628 = pneg %p1627
    $region38: #{attention_model_forward.1} parent=5 // pred_check_branch
      %1630 = sbr.rel (%p1628) target = $region40
    $region39: #{attention_model_forward.1} parent=5 // pred_region
      %s1631 = ssub.s32 %s9, 2
      // Predicated region
      $region41: #{attention_model_forward.1} parent=39 // pred_check
        %p1632 = pneg %p106
      $region42: #{attention_model_forward.1} parent=39 // pred_check_branch
        %1634 = sbr.rel (%p1632) target = $region44
      $region43: #{attention_model_forward.1} parent=39 // pred_region
        %p1635 = scmp.lt.s32.totalorder %s15, 1
        %s1636 = scalar_select %p1635, %s15, 1
        %s1637 = smul.addr %s1636, 2
        %s1638 = smul.addr %s1637, 4
        %s1639 = scalar_lea.vmem %s3, %s1638
      $region44: #{attention_model_forward.1} parent=39 // pred_fallthru
        _
    $region40: #{attention_model_forward.1} parent=5 // pred_fallthru
      _
  $region6: #{attention_model_forward.1} parent=0 // loop_footer
    %s13 = sadd.s32 1, %s9
  $region7: #{attention_model_forward.1} parent=0 // loop_footer_branch
    %8 = sbr.rel target = $region3
  $region8: #{attention_model_forward.1} parent=0 // loop_exit
    _

</llo_original>
